<compile_context>
chip_gen: v5e
topology: v5e:2x2
jax: 0.10.0
libtpu: 0.0.40
codegen_flags: <defaults>
</compile_context>

<pallas_src>
import jax
import jax.numpy as jnp
from jax.experimental import pallas as pl
from jax.experimental.pallas import tpu as pltpu

# ----------------------------- model hyper-params -----------------------------
HID = 32                  # args.hid
HEADS = 2                 # args.head
CH = HID // HEADS         # per-head channels; concat(heads) -> HID
NUM_LAYER = 2             # args.num_layer
NEG_SLOPE = 0.2           # GATConv LeakyReLU slope

NUM_DRUG = 6
NUM_CELL = 4
NUM_PROTEIN = 12
BATCH = 8


def _r8(n):
    return ((n + 7) // 8) * 8


# ----------------------------- packed-slab layouts -----------------------------
# graph slab [G_ROWS, HID + NUM_PROTEIN]: node row = [embedding | adjacency row over proteins]
PROT_ROW = 0
DRUG_ROW = _r8(NUM_PROTEIN)
CELL_ROW = DRUG_ROW + _r8(NUM_DRUG)
G_ROWS = CELL_ROW + _r8(NUM_CELL)
G_COLS = HID + NUM_PROTEIN

# GAT weights + classifier-w1 slab [W_ROWS, 6*HID]
LAYER_STRIDE = _r8(HID + 1)           # 40: 32 weight rows + 1 bias row, 8-aligned
SRC_W = 2 * HID + 2 * HEADS           # 68: [w_src_d | w_src_c | a_src_d fold | a_src_c fold]
W1_ROW = LAYER_STRIDE * (1 + NUM_LAYER)
W_ROWS = W1_ROW + 3 * HID
W_COLS = 6 * HID

# classifier slab [CLS_ROWS, 6*HID]  (b1 / w2 / b2 / w3 / b3, 8-aligned sections)
B1_ROW = 0
W2_ROW = 8
B2_ROW = W2_ROW + 6 * HID
W3_ROW = _r8(B2_ROW + 1)
B3_ROW = W3_ROW + 2 * HID
CLS_ROWS = _r8(B3_ROW + 1)

# per-graph node table produced by the encoder kernel (w1 pre-applied per node)
NODE_SLOT = _r8(max(NUM_DRUG, NUM_CELL))
TAB_ROWS = 3 * NODE_SLOT
assert NUM_DRUG <= NODE_SLOT and NUM_CELL <= NODE_SLOT

_VMEM = pl.BlockSpec(memory_space=pltpu.MemorySpace.VMEM)


# ----------------------------------------------------------------------------
# Kernel 1: query-independent graph encoding (runs once per graph, cacheable).
#   graph slab + folded GAT/w1 weights  ->  node table [TAB_ROWS, 6*HID]:
#     rows [0:6)   = ed_n @ w1a   (drug1 contribution to classifier layer 1)
#     rows [8:14)  = ed_n @ w1b   (drug2 contribution)
#     rows [16:20) = ec_n @ w1c   (cell contribution)
# ----------------------------------------------------------------------------
def _encoder_kernel(g_ref, w_ref, tab_ref):
    # per-head output-channel lane masks (compile-time constants, hoisted)
    lane = jax.lax.broadcasted_iota(jnp.int32, (1, HID), 1)
    head_masks = [((lane >= h * CH) & (lane < (h + 1) * CH)).astype(jnp.float32)
                  for h in range(HEADS)]

    def gat(a_s, a_d, xs, adj, bias):
        """Masked-softmax GAT with the heads stacked along sublanes.
           a_s:[Ns,HEADS]  a_d:[Nd,HEADS]  xs:[Ns,HID]  adj:[Nd,Ns]  bias:[1,HID] (f32)."""
        nd, ns = adj.shape
        a_sT = a_s.T                                      # [HEADS, Ns]: one small transpose/layer
        rows = jnp.concatenate(
            [jnp.broadcast_to(a_sT[h:h + 1, :], (nd, ns)) for h in range(HEADS)], axis=0)
        cols = jnp.concatenate([a_d[:, h:h + 1] for h in range(HEADS)], axis=0)
        adj2 = jnp.concatenate([adj] * HEADS, axis=0)     # [HEADS*Nd, Ns]
        s = cols + rows
        s = jnp.where(s > 0, s, NEG_SLOPE * s)            # LeakyReLU
        s = jnp.where(adj2 > 0, s, -1e30)                 # mask BEFORE row-max (robust softmax)
        s = s - jnp.max(s, axis=-1, keepdims=True)
        p = jnp.exp(s) * adj2
        denom = jnp.sum(p, axis=-1, keepdims=True)
        attn = p / jnp.maximum(denom, 1e-20)              # exact softmax; isolated dst -> 0 msg
        msg = jnp.dot(attn.astype(jnp.bfloat16), xs.astype(jnp.bfloat16),
                      preferred_element_type=jnp.float32)  # one matmul for both heads
        out = bias
        for h in range(HEADS):
            out = out + msg[h * nd:(h + 1) * nd, :] * head_masks[h]
        return out

    # ---- graph slab pieces ----
    ep = g_ref[PROT_ROW:PROT_ROW + NUM_PROTEIN, 0:HID]
    app = g_ref[PROT_ROW:PROT_ROW + NUM_PROTEIN, HID:HID + NUM_PROTEIN]
    ed = g_ref[DRUG_ROW:DRUG_ROW + NUM_DRUG, 0:HID]
    adp = g_ref[DRUG_ROW:DRUG_ROW + NUM_DRUG, HID:HID + NUM_PROTEIN]
    ec = g_ref[CELL_ROW:CELL_ROW + NUM_CELL, 0:HID]
    acp = g_ref[CELL_ROW:CELL_ROW + NUM_CELL, HID:HID + NUM_PROTEIN]

    # ---- protein_enc (self-attention; self-loops baked into adj_pp; no relu) ----
    W0 = w_ref[0:HID, 0:HID + 2 * HEADS].astype(jnp.bfloat16)  # [wsrc | wsrc@asrc | wdst@adst]
    b0 = w_ref[HID:HID + 1, 0:HID]
    Z0 = jnp.dot(ep.astype(jnp.bfloat16), W0, preferred_element_type=jnp.float32)
    ep = gat(Z0[:, HID:HID + HEADS], Z0[:, HID + HEADS:HID + 2 * HEADS],
             Z0[:, 0:HID], app, b0)

    # ---- NUM_LAYER x (rev_d-p, rev_c-p); drug & cell src projections fused per layer ----
    for l in range(NUM_LAYER):
        base = LAYER_STRIDE * (1 + l)
        Ws = w_ref[base:base + HID, 0:SRC_W].astype(jnp.bfloat16)                     # [32, 68]
        Wdd = w_ref[base:base + HID, SRC_W:SRC_W + HEADS].astype(jnp.bfloat16)        # [32, 2]
        Wdc = w_ref[base:base + HID, SRC_W + HEADS:SRC_W + 2 * HEADS].astype(jnp.bfloat16)
        bd_ = w_ref[base + HID:base + HID + 1, 0:HID]
        bc_ = w_ref[base + HID:base + HID + 1, HID:2 * HID]

        Zs = jnp.dot(ep.astype(jnp.bfloat16), Ws, preferred_element_type=jnp.float32)  # [Np, 68]
        ad_d = jnp.dot(ed.astype(jnp.bfloat16), Wdd, preferred_element_type=jnp.float32)
        ad_c = jnp.dot(ec.astype(jnp.bfloat16), Wdc, preferred_element_type=jnp.float32)

        ed = jnp.maximum(
            gat(Zs[:, 2 * HID:2 * HID + HEADS], ad_d, Zs[:, 0:HID], adp, bd_), 0.0)
        ec = jnp.maximum(
            gat(Zs[:, 2 * HID + HEADS:2 * HID + 2 * HEADS], ad_c, Zs[:, HID:2 * HID], acp, bc_),
            0.0)

    # ---- L2-normalize (matches F.normalize eps), pre-apply classifier layer-1 blocks ----
    def l2n(x):
        ss = jnp.sum(x * x, axis=-1, keepdims=True)
        return x * jax.lax.rsqrt(jnp.maximum(ss, 1e-24))

    ed_n = l2n(ed).astype(jnp.bfloat16)
    ec_n = l2n(ec).astype(jnp.bfloat16)
    w1a = w_ref[W1_ROW:W1_ROW + HID, :].astype(jnp.bfloat16)
    w1b = w_ref[W1_ROW + HID:W1_ROW + 2 * HID, :].astype(jnp.bfloat16)
    w1c = w_ref[W1_ROW + 2 * HID:W1_ROW + 3 * HID, :].astype(jnp.bfloat16)

    tab_ref[...] = jnp.zeros_like(tab_ref)
    tab_ref[0:NUM_DRUG, :] = jnp.dot(ed_n, w1a, preferred_element_type=jnp.float32)
    tab_ref[NODE_SLOT:NODE_SLOT + NUM_DRUG, :] = jnp.dot(
        ed_n, w1b, preferred_element_type=jnp.float32)
    tab_ref[2 * NODE_SLOT:2 * NODE_SLOT + NUM_CELL, :] = jnp.dot(
        ec_n, w1c, preferred_element_type=jnp.float32)


# ----------------------------------------------------------------------------
# Kernel 2: per-query classifier.
#   one [B, TAB_ROWS] one-hot (3 ones/row) @ node table == gather(d1,d2,cell) + concat +
#   Linear1 in a single matmul; then ReLU, Linear2, ReLU, Linear3.
# ----------------------------------------------------------------------------
def _query_kernel(idx_ref, tab_ref, cls_ref, out_ref):
    idx = idx_ref[...]                                          # [B, 3] int32 (d1, d2, cell)
    b = idx.shape[0]
    r = jax.lax.broadcasted_iota(jnp.int32, (b, TAB_ROWS), 1)
    oh = ((r == idx[:, 0:1])
          | (r == idx[:, 1:2] + NODE_SLOT)
          | (r == idx[:, 2:3] + 2 * NODE_SLOT))
    oh = oh.astype(jnp.float32).astype(jnp.bfloat16)            # [B, TAB_ROWS]

    z = jnp.dot(oh, tab_ref[...].astype(jnp.bfloat16),
                preferred_element_type=jnp.float32) + cls_ref[B1_ROW:B1_ROW + 1, 0:6 * HID]
    z = jnp.maximum(z, 0.0)
    w2 = cls_ref[W2_ROW:W2_ROW + 6 * HID, 0:2 * HID].astype(jnp.bfloat16)
    z = (jnp.dot(z.astype(jnp.bfloat16), w2, preferred_element_type=jnp.float32)
         + cls_ref[B2_ROW:B2_ROW + 1, 0:2 * HID])
    z = jnp.maximum(z, 0.0)
    w3 = cls_ref[W3_ROW:W3_ROW + 2 * HID, 0:2].astype(jnp.bfloat16)
    z = (jnp.dot(z.astype(jnp.bfloat16), w3, preferred_element_type=jnp.float32)
         + cls_ref[B3_ROW:B3_ROW + 1, 0:2])
    out_ref[...] = z


# ----------------------------------------------------------------------------
# Wrappers
# ----------------------------------------------------------------------------
def encode_graph(graph_slab, weight_slab):
    """Query-independent part of the forward. Run once per graph and cache the result."""
    return pl.pallas_call(
        _encoder_kernel,
        out_shape=jax.ShapeDtypeStruct((TAB_ROWS, 6 * HID), jnp.float32),
        in_specs=[_VMEM, _VMEM],
        out_specs=_VMEM,
    )(graph_slab, weight_slab)


def classify(node_tab, cls_slab, drug1, drug2, cell):
    b = drug1.shape[0]
    idx = jnp.stack([drug1.astype(jnp.int32), drug2.astype(jnp.int32),
                     cell.astype(jnp.int32)], axis=1)           # [B, 3]
    # NOTE(v7x): for batches >= 2x128 add a parallel batch grid axis here; at B=8 grid=().
    return pl.pallas_call(
        _query_kernel,
        out_shape=jax.ShapeDtypeStruct((b, 2), jnp.float32),
        in_specs=[_VMEM, _VMEM, _VMEM],
        out_specs=_VMEM,
    )(idx, node_tab, cls_slab)


def ae_forward(packed, drug1, drug2, cell):
    node_tab = encode_graph(packed["graph_slab"], packed["weight_slab"])
    return classify(node_tab, packed["cls_slab"], drug1, drug2, cell)


# ----------------------------------------------------------------------------
# Parameter init (deterministic, replaces checkpoint load) + one-time slab packing
# ----------------------------------------------------------------------------
def _init_gat_params(key, in_dim, tie_src_dst=False):
    k1, k2, k3, k4 = jax.random.split(key, 4)
    w_src = jax.random.normal(k1, (in_dim, HID), jnp.float32) * 0.1
    w_dst = w_src if tie_src_dst else jax.random.normal(k2, (in_dim, HID), jnp.float32) * 0.1
    att_src = jax.random.normal(k3, (HEADS, CH), jnp.float32) * 0.1
    att_dst = jax.random.normal(k4, (HEADS, CH), jnp.float32) * 0.1
    bias = jnp.zeros((1, HID), jnp.float32)
    return dict(w_src=w_src, w_dst=w_dst, att_src=att_src, att_dst=att_dst, bias=bias)


def _init_linear(key, fan_in, fan_out):
    kw, kb = jax.random.split(key)
    w = jax.random.normal(kw, (fan_in, fan_out), jnp.float32) * (1.0 / jnp.sqrt(fan_in))
    b = jax.random.normal(kb, (1, fan_out), jnp.float32) * 0.01
    return w, b


def _blockdiag_att(att):
    """[HEADS, CH] per-head attention vectors -> block-diagonal [HID, HEADS]."""
    a = jnp.zeros((HID, HEADS), jnp.float32)
    for h in range(HEADS):
        a = a.at[h * CH:(h + 1) * CH, h].set(att[h])
    return a


def fold_params(raw, params, graph):
    """Pre-fold everything into 3 VMEM slabs (2-3 input DMAs per kernel instead of ~21)."""
    # ---- graph + embeddings slab ----
    g = jnp.zeros((G_ROWS, G_COLS), jnp.float32)
    g = g.at[PROT_ROW:PROT_ROW + NUM_PROTEIN, 0:HID].set(params["protein_emb"])
    g = g.at[PROT_ROW:PROT_ROW + NUM_PROTEIN, HID:].set(graph["adj_pp"])
    g = g.at[DRUG_ROW:DRUG_ROW + NUM_DRUG, 0:HID].set(params["drug_emb"])
    g = g.at[DRUG_ROW:DRUG_ROW + NUM_DRUG, HID:].set(graph["adj_dp"])
    g = g.at[CELL_ROW:CELL_ROW + NUM_CELL, 0:HID].set(params["cell_emb"])
    g = g.at[CELL_ROW:CELL_ROW + NUM_CELL, HID:].set(graph["adj_cp"])

    # ---- GAT weights (attention vectors pre-folded) + classifier w1 slab ----
    w = jnp.zeros((W_ROWS, W_COLS), jnp.float32)
    p = raw["protein_enc"]
    W0 = jnp.concatenate([p["w_src"],
                          p["w_src"] @ _blockdiag_att(p["att_src"]),
                          p["w_dst"] @ _blockdiag_att(p["att_dst"])], axis=1)      # [HID, 36]
    w = w.at[0:HID, 0:W0.shape[1]].set(W0)
    w = w.at[HID, 0:HID].set(p["bias"][0])
    for l in range(NUM_LAYER):
        d = raw["convs"][l]["rev_d-p"]
        c = raw["convs"][l]["rev_c-p"]
        Wl = jnp.concatenate([d["w_src"], c["w_src"],
                              d["w_src"] @ _blockdiag_att(d["att_src"]),
                              c["w_src"] @ _blockdiag_att(c["att_src"]),
                              d["w_dst"] @ _blockdiag_att(d["att_dst"]),
                              c["w_dst"] @ _blockdiag_att(c["att_dst"])], axis=1)  # [HID, 72]
        base = LAYER_STRIDE * (1 + l)
        w = w.at[base:base + HID, 0:Wl.shape[1]].set(Wl)
        w = w.at[base + HID, 0:HID].set(d["bias"][0])
        w = w.at[base + HID, HID:2 * HID].set(c["bias"][0])
    w = w.at[W1_ROW:W1_ROW + 3 * HID, :].set(raw["classifier"]["w1"])

    # ---- classifier slab (b1, w2, b2, w3, b3) ----
    cl = raw["classifier"]
    s = jnp.zeros((CLS_ROWS, 6 * HID), jnp.float32)
    s = s.at[B1_ROW, 0:6 * HID].set(cl["b1"][0])
    s = s.at[W2_ROW:W2_ROW + 6 * HID, 0:2 * HID].set(cl["w2"])
    s = s.at[B2_ROW, 0:2 * HID].set(cl["b2"][0])
    s = s.at[W3_ROW:W3_ROW + 2 * HID, 0:2].set(cl["w3"])
    s = s.at[B3_ROW, 0:2].set(cl["b3"][0])
    return dict(graph_slab=g, weight_slab=w, cls_slab=s)


if __name__ == "__main__":
    keys = jax.random.split(jax.random.PRNGKey(0), 20)

    raw = {
        "protein_enc": _init_gat_params(keys[3], HID, tie_src_dst=True),
        "convs": [
            {"rev_d-p": _init_gat_params(keys[4 + 2 * l], HID),
             "rev_c-p": _init_gat_params(keys[5 + 2 * l], HID)}
            for l in range(NUM_LAYER)
        ],
    }
    w1, b1 = _init_linear(keys[10], 3 * HID, 6 * HID)
    w2, b2 = _init_linear(keys[11], 6 * HID, 2 * HID)
    w3, b3 = _init_linear(keys[12], 2 * HID, 2)
    raw["classifier"] = dict(w1=w1, b1=b1, w2=w2, b2=b2, w3=w3, b3=b3)

    params = {
        "drug_emb": jax.random.normal(keys[0], (NUM_DRUG, HID), jnp.float32),
        "cell_emb": jax.random.normal(keys[1], (NUM_CELL, HID), jnp.float32),
        "protein_emb": jax.random.normal(keys[2], (NUM_PROTEIN, HID), jnp.float32),
    }

    # graph: dense adjacency masks [num_dst, num_src]
    # (x_drug/x_cell/x_protein node-id features are arange() -> identity gathers, elided)
    adj_pp = jax.random.bernoulli(keys[13], 0.4, (NUM_PROTEIN, NUM_PROTEIN)).astype(jnp.float32)
    adj_pp = jnp.maximum(adj_pp, jnp.eye(NUM_PROTEIN, dtype=jnp.float32))   # PyG add_self_loops
    adj_dp = jax.random.bernoulli(keys[14], 0.5, (NUM_DRUG, NUM_PROTEIN)).astype(jnp.float32)
    adj_cp = jax.random.bernoulli(keys[15], 0.5, (NUM_CELL, NUM_PROTEIN)).astype(jnp.float32)
    graph = {"adj_pp": adj_pp, "adj_dp": adj_dp, "adj_cp": adj_cp}

    drug1 = jax.random.randint(keys[16], (BATCH,), 0, NUM_DRUG)
    drug2 = jax.random.randint(keys[17], (BATCH,), 0, NUM_DRUG)
    cell = jax.random.randint(keys[18], (BATCH,), 0, NUM_CELL)

    packed = fold_params(raw, params, graph)   # one-time packing (replaces checkpoint load)

    # full forward (both kernels)
    logits = jax.jit(ae_forward)(packed, drug1, drug2, cell)
    jax.block_until_ready(logits)
    assert logits.shape == (BATCH, 2) and logits.dtype == jnp.float32
    assert bool(jnp.all(jnp.isfinite(logits)))

    # cached-graph path: encode once, reuse the node table for every query batch
    node_tab = jax.jit(encode_graph)(packed["graph_slab"], packed["weight_slab"])
    logits2 = jax.jit(classify)(node_tab, packed["cls_slab"], drug1, drug2, cell)
    jax.block_until_ready(logits2)
    assert bool(jnp.allclose(logits, logits2, atol=1e-5, rtol=1e-5))

    print("KERNEL_OK")
</pallas_src>

<mosaic_0001>
module attributes {stable_mosaic.version = 11 : i64} {
  func.func @_encoder_kernel(%arg0: memref<32x44xf32, #tpu.memory_space<vmem>>, %arg1: memref<216x192xf32, #tpu.memory_space<vmem>>, %arg2: memref<24x192xf32, #tpu.memory_space<vmem>>) attributes {dimension_semantics = [], scalar_prefetch = 0 : i64, scratch_operands = 0 : i64, tpu.core_type = #tpu.core_type<tc>} {
    %0 = tpu.iota {dimensions = array<i32: 1>} : vector<1x32xi32>
    %c0_i32 = arith.constant 0 : i32
    %1 = vector.broadcast %c0_i32 : i32 to vector<1x32xi32>
    %2 = arith.cmpi sge, %0, %1 : vector<1x32xi32>
    %c16_i32 = arith.constant 16 : i32
    %3 = vector.broadcast %c16_i32 : i32 to vector<1x32xi32>
    %4 = arith.cmpi slt, %0, %3 : vector<1x32xi32>
    %5 = arith.andi %2, %4 : vector<1x32xi1>
    %6 = arith.extui %5 : vector<1x32xi1> to vector<1x32xi32>
    %7 = arith.sitofp %6 : vector<1x32xi32> to vector<1x32xf32>
    %c16_i32_0 = arith.constant 16 : i32
    %8 = vector.broadcast %c16_i32_0 : i32 to vector<1x32xi32>
    %9 = arith.cmpi sge, %0, %8 : vector<1x32xi32>
    %c32_i32 = arith.constant 32 : i32
    %10 = vector.broadcast %c32_i32 : i32 to vector<1x32xi32>
    %11 = arith.cmpi slt, %0, %10 : vector<1x32xi32>
    %12 = arith.andi %9, %11 : vector<1x32xi1>
    %13 = arith.extui %12 : vector<1x32xi1> to vector<1x32xi32>
    %14 = arith.sitofp %13 : vector<1x32xi32> to vector<1x32xf32>
    %c0 = arith.constant 0 : index
    %c0_1 = arith.constant 0 : index
    %15 = vector.load %arg0[%c0, %c0_1] : memref<32x44xf32, #tpu.memory_space<vmem>>, vector<12x32xf32>
    %c0_2 = arith.constant 0 : index
    %c32 = arith.constant 32 : index
    %16 = vector.load %arg0[%c0_2, %c32] : memref<32x44xf32, #tpu.memory_space<vmem>>, vector<12x12xf32>
    %c16 = arith.constant 16 : index
    %c0_3 = arith.constant 0 : index
    %17 = vector.load %arg0[%c16, %c0_3] : memref<32x44xf32, #tpu.memory_space<vmem>>, vector<6x32xf32>
    %c16_4 = arith.constant 16 : index
    %c32_5 = arith.constant 32 : index
    %18 = vector.load %arg0[%c16_4, %c32_5] : memref<32x44xf32, #tpu.memory_space<vmem>>, vector<6x12xf32>
    %c24 = arith.constant 24 : index
    %c0_6 = arith.constant 0 : index
    %19 = vector.load %arg0[%c24, %c0_6] : memref<32x44xf32, #tpu.memory_space<vmem>>, vector<4x32xf32>
    %c24_7 = arith.constant 24 : index
    %c32_8 = arith.constant 32 : index
    %20 = vector.load %arg0[%c24_7, %c32_8] : memref<32x44xf32, #tpu.memory_space<vmem>>, vector<4x12xf32>
    %c0_9 = arith.constant 0 : index
    %c0_10 = arith.constant 0 : index
    %21 = vector.load %arg1[%c0_9, %c0_10] : memref<216x192xf32, #tpu.memory_space<vmem>>, vector<32x36xf32>
    %22 = arith.truncf %21 : vector<32x36xf32> to vector<32x36xbf16>
    %c32_11 = arith.constant 32 : index
    %c0_12 = arith.constant 0 : index
    %23 = vector.load %arg1[%c32_11, %c0_12] : memref<216x192xf32, #tpu.memory_space<vmem>>, vector<1x32xf32>
    %24 = arith.truncf %15 : vector<12x32xf32> to vector<12x32xbf16>
    %cst = arith.constant dense<0.000000e+00> : vector<12x36xf32>
    %25 = tpu.matmul %24, %22, %cst {dimension_numbers = #tpu.dot_dimension_numbers<[1], [0], [0], [1], [0, 0, 1, 1], [], []>} : vector<12x32xbf16>, vector<32x36xbf16>, vector<12x36xf32> -> vector<12x36xf32>
    %26 = vector.extract_strided_slice %25 {offsets = [0, 32], sizes = [12, 2], strides = [1, 1]} : vector<12x36xf32> to vector<12x2xf32>
    %27 = vector.extract_strided_slice %25 {offsets = [0, 34], sizes = [12, 2], strides = [1, 1]} : vector<12x36xf32> to vector<12x2xf32>
    %28 = vector.extract_strided_slice %25 {offsets = [0, 0], sizes = [12, 32], strides = [1, 1]} : vector<12x36xf32> to vector<12x32xf32>
    %29 = tpu.transpose %26, [1, 0] : vector<12x2xf32> -> vector<2x12xf32>
    %30 = vector.extract_strided_slice %29 {offsets = [0, 0], sizes = [1, 12], strides = [1, 1]} : vector<2x12xf32> to vector<1x12xf32>
    %31 = vector.shape_cast %30 : vector<1x12xf32> to vector<1x12xf32>
    %32 = vector.broadcast %31 : vector<1x12xf32> to vector<12x12xf32>
    %33 = vector.extract_strided_slice %29 {offsets = [1, 0], sizes = [1, 12], strides = [1, 1]} : vector<2x12xf32> to vector<1x12xf32>
    %34 = vector.shape_cast %33 : vector<1x12xf32> to vector<1x12xf32>
    %35 = vector.broadcast %34 : vector<1x12xf32> to vector<12x12xf32>
    %36 = tpu.concatenate %32, %35 in 0 : vector<12x12xf32>, vector<12x12xf32> -> vector<24x12xf32>
    %37 = vector.extract_strided_slice %27 {offsets = [0, 0], sizes = [12, 1], strides = [1, 1]} : vector<12x2xf32> to vector<12x1xf32>
    %38 = vector.extract_strided_slice %27 {offsets = [0, 1], sizes = [12, 1], strides = [1, 1]} : vector<12x2xf32> to vector<12x1xf32>
    %39 = tpu.concatenate %37, %38 in 0 : vector<12x1xf32>, vector<12x1xf32> -> vector<24x1xf32>
    %40 = tpu.concatenate %16, %16 in 0 : vector<12x12xf32>, vector<12x12xf32> -> vector<24x12xf32>
    %41 = vector.broadcast %39 : vector<24x1xf32> to vector<24x12xf32>
    %42 = arith.addf %41, %36 : vector<24x12xf32>
    %cst_13 = arith.constant 0.000000e+00 : f32
    %43 = vector.broadcast %cst_13 : f32 to vector<24x12xf32>
    %44 = arith.cmpf ogt, %42, %43 : vector<24x12xf32>
    %cst_14 = arith.constant 2.000000e-01 : f32
    %45 = vector.broadcast %cst_14 : f32 to vector<24x12xf32>
    %46 = arith.mulf %45, %42 : vector<24x12xf32>
    %47 = arith.select %44, %42, %46 : vector<24x12xi1>, vector<24x12xf32>
    %cst_15 = arith.constant 0.000000e+00 : f32
    %48 = vector.broadcast %cst_15 : f32 to vector<24x12xf32>
    %49 = arith.cmpf ogt, %40, %48 : vector<24x12xf32>
    %cst_16 = arith.constant -1.000000e+30 : f32
    %50 = vector.broadcast %cst_16 : f32 to vector<24x12xf32>
    %51 = arith.select %49, %47, %50 : vector<24x12xi1>, vector<24x12xf32>
    %cst_17 = arith.constant dense<0xFF800000> : vector<24xf32>
    %52 = vector.multi_reduction <maximumf>, %51, %cst_17 [1] : vector<24x12xf32> to vector<24xf32>
    %53 = vector.shape_cast %52 : vector<24xf32> to vector<24x1xf32>
    %54 = vector.broadcast %53 : vector<24x1xf32> to vector<24x12xf32>
    %55 = arith.subf %51, %54 : vector<24x12xf32>
    %56 = math.exp %55 : vector<24x12xf32>
    %57 = arith.mulf %56, %40 : vector<24x12xf32>
    %cst_18 = arith.constant dense<0.000000e+00> : vector<24xf32>
    %58 = vector.multi_reduction <add>, %57, %cst_18 [1] : vector<24x12xf32> to vector<24xf32>
    %59 = vector.shape_cast %58 : vector<24xf32> to vector<24x1xf32>
    %cst_19 = arith.constant 9.99999968E-21 : f32
    %60 = vector.broadcast %cst_19 : f32 to vector<24x1xf32>
    %61 = arith.maximumf %59, %60 : vector<24x1xf32>
    %62 = vector.broadcast %61 : vector<24x1xf32> to vector<24x12xf32>
    %63 = arith.divf %57, %62 : vector<24x12xf32>
    %64 = arith.truncf %63 : vector<24x12xf32> to vector<24x12xbf16>
    %65 = arith.truncf %28 : vector<12x32xf32> to vector<12x32xbf16>
    %cst_20 = arith.constant dense<0.000000e+00> : vector<24x32xf32>
    %66 = tpu.matmul %64, %65, %cst_20 {dimension_numbers = #tpu.dot_dimension_numbers<[1], [0], [0], [1], [0, 0, 1, 1], [], []>} : vector<24x12xbf16>, vector<12x32xbf16>, vector<24x32xf32> -> vector<24x32xf32>
    %67 = vector.extract_strided_slice %66 {offsets = [0, 0], sizes = [12, 32], strides = [1, 1]} : vector<24x32xf32> to vector<12x32xf32>
    %68 = vector.broadcast %7 : vector<1x32xf32> to vector<12x32xf32>
    %69 = arith.mulf %67, %68 : vector<12x32xf32>
    %70 = vector.broadcast %23 : vector<1x32xf32> to vector<12x32xf32>
    %71 = arith.addf %70, %69 : vector<12x32xf32>
    %72 = vector.extract_strided_slice %66 {offsets = [12, 0], sizes = [12, 32], strides = [1, 1]} : vector<24x32xf32> to vector<12x32xf32>
    %73 = vector.broadcast %14 : vector<1x32xf32> to vector<12x32xf32>
    %74 = arith.mulf %72, %73 : vector<12x32xf32>
    %75 = arith.addf %71, %74 : vector<12x32xf32>
    %c40 = arith.constant 40 : index
    %c0_21 = arith.constant 0 : index
    %76 = vector.load %arg1[%c40, %c0_21] : memref<216x192xf32, #tpu.memory_space<vmem>>, vector<32x68xf32>
    %77 = arith.truncf %76 : vector<32x68xf32> to vector<32x68xbf16>
    %c40_22 = arith.constant 40 : index
    %c68 = arith.constant 68 : index
    %78 = vector.load %arg1[%c40_22, %c68] : memref<216x192xf32, #tpu.memory_space<vmem>>, vector<32x2xf32>
    %79 = arith.truncf %78 : vector<32x2xf32> to vector<32x2xbf16>
    %c40_23 = arith.constant 40 : index
    %c70 = arith.constant 70 : index
    %80 = vector.load %arg1[%c40_23, %c70] : memref<216x192xf32, #tpu.memory_space<vmem>>, vector<32x2xf32>
    %81 = arith.truncf %80 : vector<32x2xf32> to vector<32x2xbf16>
    %c72 = arith.constant 72 : index
    %c0_24 = arith.constant 0 : index
    %82 = vector.load %arg1[%c72, %c0_24] : memref<216x192xf32, #tpu.memory_space<vmem>>, vector<1x32xf32>
    %c72_25 = arith.constant 72 : index
    %c32_26 = arith.constant 32 : index
    %83 = vector.load %arg1[%c72_25, %c32_26] : memref<216x192xf32, #tpu.memory_space<vmem>>, vector<1x32xf32>
    %84 = arith.truncf %75 : vector<12x32xf32> to vector<12x32xbf16>
    %cst_27 = arith.constant dense<0.000000e+00> : vector<12x68xf32>
    %85 = tpu.matmul %84, %77, %cst_27 {dimension_numbers = #tpu.dot_dimension_numbers<[1], [0], [0], [1], [0, 0, 1, 1], [], []>} : vector<12x32xbf16>, vector<32x68xbf16>, vector<12x68xf32> -> vector<12x68xf32>
    %86 = arith.truncf %17 : vector<6x32xf32> to vector<6x32xbf16>
    %cst_28 = arith.constant dense<0.000000e+00> : vector<6x2xf32>
    %87 = tpu.matmul %86, %79, %cst_28 {dimension_numbers = #tpu.dot_dimension_numbers<[1], [0], [0], [1], [0, 0, 1, 1], [], []>} : vector<6x32xbf16>, vector<32x2xbf16>, vector<6x2xf32> -> vector<6x2xf32>
    %88 = arith.truncf %19 : vector<4x32xf32> to vector<4x32xbf16>
    %cst_29 = arith.constant dense<0.000000e+00> : vector<4x2xf32>
    %89 = tpu.matmul %88, %81, %cst_29 {dimension_numbers = #tpu.dot_dimension_numbers<[1], [0], [0], [1], [0, 0, 1, 1], [], []>} : vector<4x32xbf16>, vector<32x2xbf16>, vector<4x2xf32> -> vector<4x2xf32>
    %90 = vector.extract_strided_slice %85 {offsets = [0, 64], sizes = [12, 2], strides = [1, 1]} : vector<12x68xf32> to vector<12x2xf32>
    %91 = vector.extract_strided_slice %85 {offsets = [0, 0], sizes = [12, 32], strides = [1, 1]} : vector<12x68xf32> to vector<12x32xf32>
    %92 = tpu.transpose %90, [1, 0] : vector<12x2xf32> -> vector<2x12xf32>
    %93 = vector.extract_strided_slice %92 {offsets = [0, 0], sizes = [1, 12], strides = [1, 1]} : vector<2x12xf32> to vector<1x12xf32>
    %94 = vector.shape_cast %93 : vector<1x12xf32> to vector<1x12xf32>
    %95 = vector.broadcast %94 : vector<1x12xf32> to vector<6x12xf32>
    %96 = vector.extract_strided_slice %92 {offsets = [1, 0], sizes = [1, 12], strides = [1, 1]} : vector<2x12xf32> to vector<1x12xf32>
    %97 = vector.shape_cast %96 : vector<1x12xf32> to vector<1x12xf32>
    %98 = vector.broadcast %97 : vector<1x12xf32> to vector<6x12xf32>
    %99 = tpu.concatenate %95, %98 in 0 : vector<6x12xf32>, vector<6x12xf32> -> vector<12x12xf32>
    %100 = vector.extract_strided_slice %87 {offsets = [0, 0], sizes = [6, 1], strides = [1, 1]} : vector<6x2xf32> to vector<6x1xf32>
    %101 = vector.extract_strided_slice %87 {offsets = [0, 1], sizes = [6, 1], strides = [1, 1]} : vector<6x2xf32> to vector<6x1xf32>
    %102 = tpu.concatenate %100, %101 in 0 : vector<6x1xf32>, vector<6x1xf32> -> vector<12x1xf32>
    %103 = tpu.concatenate %18, %18 in 0 : vector<6x12xf32>, vector<6x12xf32> -> vector<12x12xf32>
    %104 = vector.broadcast %102 : vector<12x1xf32> to vector<12x12xf32>
    %105 = arith.addf %104, %99 : vector<12x12xf32>
    %cst_30 = arith.constant 0.000000e+00 : f32
    %106 = vector.broadcast %cst_30 : f32 to vector<12x12xf32>
    %107 = arith.cmpf ogt, %105, %106 : vector<12x12xf32>
    %cst_31 = arith.constant 2.000000e-01 : f32
    %108 = vector.broadcast %cst_31 : f32 to vector<12x12xf32>
    %109 = arith.mulf %108, %105 : vector<12x12xf32>
    %110 = arith.select %107, %105, %109 : vector<12x12xi1>, vector<12x12xf32>
    %cst_32 = arith.constant 0.000000e+00 : f32
    %111 = vector.broadcast %cst_32 : f32 to vector<12x12xf32>
    %112 = arith.cmpf ogt, %103, %111 : vector<12x12xf32>
    %cst_33 = arith.constant -1.000000e+30 : f32
    %113 = vector.broadcast %cst_33 : f32 to vector<12x12xf32>
    %114 = arith.select %112, %110, %113 : vector<12x12xi1>, vector<12x12xf32>
    %cst_34 = arith.constant dense<0xFF800000> : vector<12xf32>
    %115 = vector.multi_reduction <maximumf>, %114, %cst_34 [1] : vector<12x12xf32> to vector<12xf32>
    %116 = vector.shape_cast %115 : vector<12xf32> to vector<12x1xf32>
    %117 = vector.broadcast %116 : vector<12x1xf32> to vector<12x12xf32>
    %118 = arith.subf %114, %117 : vector<12x12xf32>
    %119 = math.exp %118 : vector<12x12xf32>
    %120 = arith.mulf %119, %103 : vector<12x12xf32>
    %cst_35 = arith.constant dense<0.000000e+00> : vector<12xf32>
    %121 = vector.multi_reduction <add>, %120, %cst_35 [1] : vector<12x12xf32> to vector<12xf32>
    %122 = vector.shape_cast %121 : vector<12xf32> to vector<12x1xf32>
    %cst_36 = arith.constant 9.99999968E-21 : f32
    %123 = vector.broadcast %cst_36 : f32 to vector<12x1xf32>
    %124 = arith.maximumf %122, %123 : vector<12x1xf32>
    %125 = vector.broadcast %124 : vector<12x1xf32> to vector<12x12xf32>
    %126 = arith.divf %120, %125 : vector<12x12xf32>
    %127 = arith.truncf %126 : vector<12x12xf32> to vector<12x12xbf16>
    %128 = arith.truncf %91 : vector<12x32xf32> to vector<12x32xbf16>
    %cst_37 = arith.constant dense<0.000000e+00> : vector<12x32xf32>
    %129 = tpu.matmul %127, %128, %cst_37 {dimension_numbers = #tpu.dot_dimension_numbers<[1], [0], [0], [1], [0, 0, 1, 1], [], []>} : vector<12x12xbf16>, vector<12x32xbf16>, vector<12x32xf32> -> vector<12x32xf32>
    %130 = vector.extract_strided_slice %129 {offsets = [0, 0], sizes = [6, 32], strides = [1, 1]} : vector<12x32xf32> to vector<6x32xf32>
    %131 = vector.broadcast %7 : vector<1x32xf32> to vector<6x32xf32>
    %132 = arith.mulf %130, %131 : vector<6x32xf32>
    %133 = vector.broadcast %82 : vector<1x32xf32> to vector<6x32xf32>
    %134 = arith.addf %133, %132 : vector<6x32xf32>
    %135 = vector.extract_strided_slice %129 {offsets = [6, 0], sizes = [6, 32], strides = [1, 1]} : vector<12x32xf32> to vector<6x32xf32>
    %136 = vector.broadcast %14 : vector<1x32xf32> to vector<6x32xf32>
    %137 = arith.mulf %135, %136 : vector<6x32xf32>
    %138 = arith.addf %134, %137 : vector<6x32xf32>
    %cst_38 = arith.constant 0.000000e+00 : f32
    %139 = vector.broadcast %cst_38 : f32 to vector<6x32xf32>
    %140 = arith.maximumf %138, %139 : vector<6x32xf32>
    %141 = vector.extract_strided_slice %85 {offsets = [0, 66], sizes = [12, 2], strides = [1, 1]} : vector<12x68xf32> to vector<12x2xf32>
    %142 = vector.extract_strided_slice %85 {offsets = [0, 32], sizes = [12, 32], strides = [1, 1]} : vector<12x68xf32> to vector<12x32xf32>
    %143 = tpu.transpose %141, [1, 0] : vector<12x2xf32> -> vector<2x12xf32>
    %144 = vector.extract_strided_slice %143 {offsets = [0, 0], sizes = [1, 12], strides = [1, 1]} : vector<2x12xf32> to vector<1x12xf32>
    %145 = vector.shape_cast %144 : vector<1x12xf32> to vector<1x12xf32>
    %146 = vector.broadcast %145 : vector<1x12xf32> to vector<4x12xf32>
    %147 = vector.extract_strided_slice %143 {offsets = [1, 0], sizes = [1, 12], strides = [1, 1]} : vector<2x12xf32> to vector<1x12xf32>
    %148 = vector.shape_cast %147 : vector<1x12xf32> to vector<1x12xf32>
    %149 = vector.broadcast %148 : vector<1x12xf32> to vector<4x12xf32>
    %150 = tpu.concatenate %146, %149 in 0 : vector<4x12xf32>, vector<4x12xf32> -> vector<8x12xf32>
    %151 = vector.extract_strided_slice %89 {offsets = [0, 0], sizes = [4, 1], strides = [1, 1]} : vector<4x2xf32> to vector<4x1xf32>
    %152 = vector.extract_strided_slice %89 {offsets = [0, 1], sizes = [4, 1], strides = [1, 1]} : vector<4x2xf32> to vector<4x1xf32>
    %153 = tpu.concatenate %151, %152 in 0 : vector<4x1xf32>, vector<4x1xf32> -> vector<8x1xf32>
    %154 = tpu.concatenate %20, %20 in 0 : vector<4x12xf32>, vector<4x12xf32> -> vector<8x12xf32>
    %155 = vector.broadcast %153 : vector<8x1xf32> to vector<8x12xf32>
    %156 = arith.addf %155, %150 : vector<8x12xf32>
    %cst_39 = arith.constant 0.000000e+00 : f32
    %157 = vector.broadcast %cst_39 : f32 to vector<8x12xf32>
    %158 = arith.cmpf ogt, %156, %157 : vector<8x12xf32>
    %cst_40 = arith.constant 2.000000e-01 : f32
    %159 = vector.broadcast %cst_40 : f32 to vector<8x12xf32>
    %160 = arith.mulf %159, %156 : vector<8x12xf32>
    %161 = arith.select %158, %156, %160 : vector<8x12xi1>, vector<8x12xf32>
    %cst_41 = arith.constant 0.000000e+00 : f32
    %162 = vector.broadcast %cst_41 : f32 to vector<8x12xf32>
    %163 = arith.cmpf ogt, %154, %162 : vector<8x12xf32>
    %cst_42 = arith.constant -1.000000e+30 : f32
    %164 = vector.broadcast %cst_42 : f32 to vector<8x12xf32>
    %165 = arith.select %163, %161, %164 : vector<8x12xi1>, vector<8x12xf32>
    %cst_43 = arith.constant dense<0xFF800000> : vector<8xf32>
    %166 = vector.multi_reduction <maximumf>, %165, %cst_43 [1] : vector<8x12xf32> to vector<8xf32>
    %167 = vector.shape_cast %166 : vector<8xf32> to vector<8x1xf32>
    %168 = vector.broadcast %167 : vector<8x1xf32> to vector<8x12xf32>
    %169 = arith.subf %165, %168 : vector<8x12xf32>
    %170 = math.exp %169 : vector<8x12xf32>
    %171 = arith.mulf %170, %154 : vector<8x12xf32>
    %cst_44 = arith.constant dense<0.000000e+00> : vector<8xf32>
    %172 = vector.multi_reduction <add>, %171, %cst_44 [1] : vector<8x12xf32> to vector<8xf32>
    %173 = vector.shape_cast %172 : vector<8xf32> to vector<8x1xf32>
    %cst_45 = arith.constant 9.99999968E-21 : f32
    %174 = vector.broadcast %cst_45 : f32 to vector<8x1xf32>
    %175 = arith.maximumf %173, %174 : vector<8x1xf32>
    %176 = vector.broadcast %175 : vector<8x1xf32> to vector<8x12xf32>
    %177 = arith.divf %171, %176 : vector<8x12xf32>
    %178 = arith.truncf %177 : vector<8x12xf32> to vector<8x12xbf16>
    %179 = arith.truncf %142 : vector<12x32xf32> to vector<12x32xbf16>
    %cst_46 = arith.constant dense<0.000000e+00> : vector<8x32xf32>
    %180 = tpu.matmul %178, %179, %cst_46 {dimension_numbers = #tpu.dot_dimension_numbers<[1], [0], [0], [1], [0, 0, 1, 1], [], []>} : vector<8x12xbf16>, vector<12x32xbf16>, vector<8x32xf32> -> vector<8x32xf32>
    %181 = vector.extract_strided_slice %180 {offsets = [0, 0], sizes = [4, 32], strides = [1, 1]} : vector<8x32xf32> to vector<4x32xf32>
    %182 = vector.broadcast %7 : vector<1x32xf32> to vector<4x32xf32>
    %183 = arith.mulf %181, %182 : vector<4x32xf32>
    %184 = vector.broadcast %83 : vector<1x32xf32> to vector<4x32xf32>
    %185 = arith.addf %184, %183 : vector<4x32xf32>
    %186 = vector.extract_strided_slice %180 {offsets = [4, 0], sizes = [4, 32], strides = [1, 1]} : vector<8x32xf32> to vector<4x32xf32>
    %187 = vector.broadcast %14 : vector<1x32xf32> to vector<4x32xf32>
    %188 = arith.mulf %186, %187 : vector<4x32xf32>
    %189 = arith.addf %185, %188 : vector<4x32xf32>
    %cst_47 = arith.constant 0.000000e+00 : f32
    %190 = vector.broadcast %cst_47 : f32 to vector<4x32xf32>
    %191 = arith.maximumf %189, %190 : vector<4x32xf32>
    %c80 = arith.constant 80 : index
    %c0_48 = arith.constant 0 : index
    %192 = vector.load %arg1[%c80, %c0_48] : memref<216x192xf32, #tpu.memory_space<vmem>>, vector<32x68xf32>
    %193 = arith.truncf %192 : vector<32x68xf32> to vector<32x68xbf16>
    %c80_49 = arith.constant 80 : index
    %c68_50 = arith.constant 68 : index
    %194 = vector.load %arg1[%c80_49, %c68_50] : memref<216x192xf32, #tpu.memory_space<vmem>>, vector<32x2xf32>
    %195 = arith.truncf %194 : vector<32x2xf32> to vector<32x2xbf16>
    %c80_51 = arith.constant 80 : index
    %c70_52 = arith.constant 70 : index
    %196 = vector.load %arg1[%c80_51, %c70_52] : memref<216x192xf32, #tpu.memory_space<vmem>>, vector<32x2xf32>
    %197 = arith.truncf %196 : vector<32x2xf32> to vector<32x2xbf16>
    %c112 = arith.constant 112 : index
    %c0_53 = arith.constant 0 : index
    %198 = vector.load %arg1[%c112, %c0_53] : memref<216x192xf32, #tpu.memory_space<vmem>>, vector<1x32xf32>
    %c112_54 = arith.constant 112 : index
    %c32_55 = arith.constant 32 : index
    %199 = vector.load %arg1[%c112_54, %c32_55] : memref<216x192xf32, #tpu.memory_space<vmem>>, vector<1x32xf32>
    %200 = arith.truncf %75 : vector<12x32xf32> to vector<12x32xbf16>
    %cst_56 = arith.constant dense<0.000000e+00> : vector<12x68xf32>
    %201 = tpu.matmul %200, %193, %cst_56 {dimension_numbers = #tpu.dot_dimension_numbers<[1], [0], [0], [1], [0, 0, 1, 1], [], []>} : vector<12x32xbf16>, vector<32x68xbf16>, vector<12x68xf32> -> vector<12x68xf32>
    %202 = arith.truncf %140 : vector<6x32xf32> to vector<6x32xbf16>
    %cst_57 = arith.constant dense<0.000000e+00> : vector<6x2xf32>
    %203 = tpu.matmul %202, %195, %cst_57 {dimension_numbers = #tpu.dot_dimension_numbers<[1], [0], [0], [1], [0, 0, 1, 1], [], []>} : vector<6x32xbf16>, vector<32x2xbf16>, vector<6x2xf32> -> vector<6x2xf32>
    %204 = arith.truncf %191 : vector<4x32xf32> to vector<4x32xbf16>
    %cst_58 = arith.constant dense<0.000000e+00> : vector<4x2xf32>
    %205 = tpu.matmul %204, %197, %cst_58 {dimension_numbers = #tpu.dot_dimension_numbers<[1], [0], [0], [1], [0, 0, 1, 1], [], []>} : vector<4x32xbf16>, vector<32x2xbf16>, vector<4x2xf32> -> vector<4x2xf32>
    %206 = vector.extract_strided_slice %201 {offsets = [0, 64], sizes = [12, 2], strides = [1, 1]} : vector<12x68xf32> to vector<12x2xf32>
    %207 = vector.extract_strided_slice %201 {offsets = [0, 0], sizes = [12, 32], strides = [1, 1]} : vector<12x68xf32> to vector<12x32xf32>
    %208 = tpu.transpose %206, [1, 0] : vector<12x2xf32> -> vector<2x12xf32>
    %209 = vector.extract_strided_slice %208 {offsets = [0, 0], sizes = [1, 12], strides = [1, 1]} : vector<2x12xf32> to vector<1x12xf32>
    %210 = vector.shape_cast %209 : vector<1x12xf32> to vector<1x12xf32>
    %211 = vector.broadcast %210 : vector<1x12xf32> to vector<6x12xf32>
    %212 = vector.extract_strided_slice %208 {offsets = [1, 0], sizes = [1, 12], strides = [1, 1]} : vector<2x12xf32> to vector<1x12xf32>
    %213 = vector.shape_cast %212 : vector<1x12xf32> to vector<1x12xf32>
    %214 = vector.broadcast %213 : vector<1x12xf32> to vector<6x12xf32>
    %215 = tpu.concatenate %211, %214 in 0 : vector<6x12xf32>, vector<6x12xf32> -> vector<12x12xf32>
    %216 = vector.extract_strided_slice %203 {offsets = [0, 0], sizes = [6, 1], strides = [1, 1]} : vector<6x2xf32> to vector<6x1xf32>
    %217 = vector.extract_strided_slice %203 {offsets = [0, 1], sizes = [6, 1], strides = [1, 1]} : vector<6x2xf32> to vector<6x1xf32>
    %218 = tpu.concatenate %216, %217 in 0 : vector<6x1xf32>, vector<6x1xf32> -> vector<12x1xf32>
    %219 = tpu.concatenate %18, %18 in 0 : vector<6x12xf32>, vector<6x12xf32> -> vector<12x12xf32>
    %220 = vector.broadcast %218 : vector<12x1xf32> to vector<12x12xf32>
    %221 = arith.addf %220, %215 : vector<12x12xf32>
    %cst_59 = arith.constant 0.000000e+00 : f32
    %222 = vector.broadcast %cst_59 : f32 to vector<12x12xf32>
    %223 = arith.cmpf ogt, %221, %222 : vector<12x12xf32>
    %cst_60 = arith.constant 2.000000e-01 : f32
    %224 = vector.broadcast %cst_60 : f32 to vector<12x12xf32>
    %225 = arith.mulf %224, %221 : vector<12x12xf32>
    %226 = arith.select %223, %221, %225 : vector<12x12xi1>, vector<12x12xf32>
    %cst_61 = arith.constant 0.000000e+00 : f32
    %227 = vector.broadcast %cst_61 : f32 to vector<12x12xf32>
    %228 = arith.cmpf ogt, %219, %227 : vector<12x12xf32>
    %cst_62 = arith.constant -1.000000e+30 : f32
    %229 = vector.broadcast %cst_62 : f32 to vector<12x12xf32>
    %230 = arith.select %228, %226, %229 : vector<12x12xi1>, vector<12x12xf32>
    %cst_63 = arith.constant dense<0xFF800000> : vector<12xf32>
    %231 = vector.multi_reduction <maximumf>, %230, %cst_63 [1] : vector<12x12xf32> to vector<12xf32>
    %232 = vector.shape_cast %231 : vector<12xf32> to vector<12x1xf32>
    %233 = vector.broadcast %232 : vector<12x1xf32> to vector<12x12xf32>
    %234 = arith.subf %230, %233 : vector<12x12xf32>
    %235 = math.exp %234 : vector<12x12xf32>
    %236 = arith.mulf %235, %219 : vector<12x12xf32>
    %cst_64 = arith.constant dense<0.000000e+00> : vector<12xf32>
    %237 = vector.multi_reduction <add>, %236, %cst_64 [1] : vector<12x12xf32> to vector<12xf32>
    %238 = vector.shape_cast %237 : vector<12xf32> to vector<12x1xf32>
    %cst_65 = arith.constant 9.99999968E-21 : f32
    %239 = vector.broadcast %cst_65 : f32 to vector<12x1xf32>
    %240 = arith.maximumf %238, %239 : vector<12x1xf32>
    %241 = vector.broadcast %240 : vector<12x1xf32> to vector<12x12xf32>
    %242 = arith.divf %236, %241 : vector<12x12xf32>
    %243 = arith.truncf %242 : vector<12x12xf32> to vector<12x12xbf16>
    %244 = arith.truncf %207 : vector<12x32xf32> to vector<12x32xbf16>
    %cst_66 = arith.constant dense<0.000000e+00> : vector<12x32xf32>
    %245 = tpu.matmul %243, %244, %cst_66 {dimension_numbers = #tpu.dot_dimension_numbers<[1], [0], [0], [1], [0, 0, 1, 1], [], []>} : vector<12x12xbf16>, vector<12x32xbf16>, vector<12x32xf32> -> vector<12x32xf32>
    %246 = vector.extract_strided_slice %245 {offsets = [0, 0], sizes = [6, 32], strides = [1, 1]} : vector<12x32xf32> to vector<6x32xf32>
    %247 = vector.broadcast %7 : vector<1x32xf32> to vector<6x32xf32>
    %248 = arith.mulf %246, %247 : vector<6x32xf32>
    %249 = vector.broadcast %198 : vector<1x32xf32> to vector<6x32xf32>
    %250 = arith.addf %249, %248 : vector<6x32xf32>
    %251 = vector.extract_strided_slice %245 {offsets = [6, 0], sizes = [6, 32], strides = [1, 1]} : vector<12x32xf32> to vector<6x32xf32>
    %252 = vector.broadcast %14 : vector<1x32xf32> to vector<6x32xf32>
    %253 = arith.mulf %251, %252 : vector<6x32xf32>
    %254 = arith.addf %250, %253 : vector<6x32xf32>
    %cst_67 = arith.constant 0.000000e+00 : f32
    %255 = vector.broadcast %cst_67 : f32 to vector<6x32xf32>
    %256 = arith.maximumf %254, %255 : vector<6x32xf32>
    %257 = vector.extract_strided_slice %201 {offsets = [0, 66], sizes = [12, 2], strides = [1, 1]} : vector<12x68xf32> to vector<12x2xf32>
    %258 = vector.extract_strided_slice %201 {offsets = [0, 32], sizes = [12, 32], strides = [1, 1]} : vector<12x68xf32> to vector<12x32xf32>
    %259 = tpu.transpose %257, [1, 0] : vector<12x2xf32> -> vector<2x12xf32>
    %260 = vector.extract_strided_slice %259 {offsets = [0, 0], sizes = [1, 12], strides = [1, 1]} : vector<2x12xf32> to vector<1x12xf32>
    %261 = vector.shape_cast %260 : vector<1x12xf32> to vector<1x12xf32>
    %262 = vector.broadcast %261 : vector<1x12xf32> to vector<4x12xf32>
    %263 = vector.extract_strided_slice %259 {offsets = [1, 0], sizes = [1, 12], strides = [1, 1]} : vector<2x12xf32> to vector<1x12xf32>
    %264 = vector.shape_cast %263 : vector<1x12xf32> to vector<1x12xf32>
    %265 = vector.broadcast %264 : vector<1x12xf32> to vector<4x12xf32>
    %266 = tpu.concatenate %262, %265 in 0 : vector<4x12xf32>, vector<4x12xf32> -> vector<8x12xf32>
    %267 = vector.extract_strided_slice %205 {offsets = [0, 0], sizes = [4, 1], strides = [1, 1]} : vector<4x2xf32> to vector<4x1xf32>
    %268 = vector.extract_strided_slice %205 {offsets = [0, 1], sizes = [4, 1], strides = [1, 1]} : vector<4x2xf32> to vector<4x1xf32>
    %269 = tpu.concatenate %267, %268 in 0 : vector<4x1xf32>, vector<4x1xf32> -> vector<8x1xf32>
    %270 = tpu.concatenate %20, %20 in 0 : vector<4x12xf32>, vector<4x12xf32> -> vector<8x12xf32>
    %271 = vector.broadcast %269 : vector<8x1xf32> to vector<8x12xf32>
    %272 = arith.addf %271, %266 : vector<8x12xf32>
    %cst_68 = arith.constant 0.000000e+00 : f32
    %273 = vector.broadcast %cst_68 : f32 to vector<8x12xf32>
    %274 = arith.cmpf ogt, %272, %273 : vector<8x12xf32>
    %cst_69 = arith.constant 2.000000e-01 : f32
    %275 = vector.broadcast %cst_69 : f32 to vector<8x12xf32>
    %276 = arith.mulf %275, %272 : vector<8x12xf32>
    %277 = arith.select %274, %272, %276 : vector<8x12xi1>, vector<8x12xf32>
    %cst_70 = arith.constant 0.000000e+00 : f32
    %278 = vector.broadcast %cst_70 : f32 to vector<8x12xf32>
    %279 = arith.cmpf ogt, %270, %278 : vector<8x12xf32>
    %cst_71 = arith.constant -1.000000e+30 : f32
    %280 = vector.broadcast %cst_71 : f32 to vector<8x12xf32>
    %281 = arith.select %279, %277, %280 : vector<8x12xi1>, vector<8x12xf32>
    %cst_72 = arith.constant dense<0xFF800000> : vector<8xf32>
    %282 = vector.multi_reduction <maximumf>, %281, %cst_72 [1] : vector<8x12xf32> to vector<8xf32>
    %283 = vector.shape_cast %282 : vector<8xf32> to vector<8x1xf32>
    %284 = vector.broadcast %283 : vector<8x1xf32> to vector<8x12xf32>
    %285 = arith.subf %281, %284 : vector<8x12xf32>
    %286 = math.exp %285 : vector<8x12xf32>
    %287 = arith.mulf %286, %270 : vector<8x12xf32>
    %cst_73 = arith.constant dense<0.000000e+00> : vector<8xf32>
    %288 = vector.multi_reduction <add>, %287, %cst_73 [1] : vector<8x12xf32> to vector<8xf32>
    %289 = vector.shape_cast %288 : vector<8xf32> to vector<8x1xf32>
    %cst_74 = arith.constant 9.99999968E-21 : f32
    %290 = vector.broadcast %cst_74 : f32 to vector<8x1xf32>
    %291 = arith.maximumf %289, %290 : vector<8x1xf32>
    %292 = vector.broadcast %291 : vector<8x1xf32> to vector<8x12xf32>
    %293 = arith.divf %287, %292 : vector<8x12xf32>
    %294 = arith.truncf %293 : vector<8x12xf32> to vector<8x12xbf16>
    %295 = arith.truncf %258 : vector<12x32xf32> to vector<12x32xbf16>
    %cst_75 = arith.constant dense<0.000000e+00> : vector<8x32xf32>
    %296 = tpu.matmul %294, %295, %cst_75 {dimension_numbers = #tpu.dot_dimension_numbers<[1], [0], [0], [1], [0, 0, 1, 1], [], []>} : vector<8x12xbf16>, vector<12x32xbf16>, vector<8x32xf32> -> vector<8x32xf32>
    %297 = vector.extract_strided_slice %296 {offsets = [0, 0], sizes = [4, 32], strides = [1, 1]} : vector<8x32xf32> to vector<4x32xf32>
    %298 = vector.broadcast %7 : vector<1x32xf32> to vector<4x32xf32>
    %299 = arith.mulf %297, %298 : vector<4x32xf32>
    %300 = vector.broadcast %199 : vector<1x32xf32> to vector<4x32xf32>
    %301 = arith.addf %300, %299 : vector<4x32xf32>
    %302 = vector.extract_strided_slice %296 {offsets = [4, 0], sizes = [4, 32], strides = [1, 1]} : vector<8x32xf32> to vector<4x32xf32>
    %303 = vector.broadcast %14 : vector<1x32xf32> to vector<4x32xf32>
    %304 = arith.mulf %302, %303 : vector<4x32xf32>
    %305 = arith.addf %301, %304 : vector<4x32xf32>
    %cst_76 = arith.constant 0.000000e+00 : f32
    %306 = vector.broadcast %cst_76 : f32 to vector<4x32xf32>
    %307 = arith.maximumf %305, %306 : vector<4x32xf32>
    %308 = arith.mulf %256, %256 : vector<6x32xf32>
    %cst_77 = arith.constant dense<0.000000e+00> : vector<6xf32>
    %309 = vector.multi_reduction <add>, %308, %cst_77 [1] : vector<6x32xf32> to vector<6xf32>
    %310 = vector.shape_cast %309 : vector<6xf32> to vector<6x1xf32>
    %cst_78 = arith.constant 1.000000e-24 : f32
    %311 = vector.broadcast %cst_78 : f32 to vector<6x1xf32>
    %312 = arith.maximumf %310, %311 : vector<6x1xf32>
    %313 = math.rsqrt %312 : vector<6x1xf32>
    %314 = vector.broadcast %313 : vector<6x1xf32> to vector<6x32xf32>
    %315 = arith.mulf %256, %314 : vector<6x32xf32>
    %316 = arith.truncf %315 : vector<6x32xf32> to vector<6x32xbf16>
    %317 = arith.mulf %307, %307 : vector<4x32xf32>
    %cst_79 = arith.constant dense<0.000000e+00> : vector<4xf32>
    %318 = vector.multi_reduction <add>, %317, %cst_79 [1] : vector<4x32xf32> to vector<4xf32>
    %319 = vector.shape_cast %318 : vector<4xf32> to vector<4x1xf32>
    %cst_80 = arith.constant 1.000000e-24 : f32
    %320 = vector.broadcast %cst_80 : f32 to vector<4x1xf32>
    %321 = arith.maximumf %319, %320 : vector<4x1xf32>
    %322 = math.rsqrt %321 : vector<4x1xf32>
    %323 = vector.broadcast %322 : vector<4x1xf32> to vector<4x32xf32>
    %324 = arith.mulf %307, %323 : vector<4x32xf32>
    %325 = arith.truncf %324 : vector<4x32xf32> to vector<4x32xbf16>
    %c120 = arith.constant 120 : index
    %c0_81 = arith.constant 0 : index
    %326 = vector.load %arg1[%c120, %c0_81] : memref<216x192xf32, #tpu.memory_space<vmem>>, vector<32x192xf32>
    %327 = arith.truncf %326 : vector<32x192xf32> to vector<32x192xbf16>
    %c152 = arith.constant 152 : index
    %c0_82 = arith.constant 0 : index
    %328 = vector.load %arg1[%c152, %c0_82] : memref<216x192xf32, #tpu.memory_space<vmem>>, vector<32x192xf32>
    %329 = arith.truncf %328 : vector<32x192xf32> to vector<32x192xbf16>
    %c184 = arith.constant 184 : index
    %c0_83 = arith.constant 0 : index
    %330 = vector.load %arg1[%c184, %c0_83] : memref<216x192xf32, #tpu.memory_space<vmem>>, vector<32x192xf32>
    %331 = arith.truncf %330 : vector<32x192xf32> to vector<32x192xbf16>
    %cst_84 = arith.constant 0.000000e+00 : f32
    %332 = vector.broadcast %cst_84 : f32 to vector<24x192xf32>
    %c0_85 = arith.constant 0 : index
    %c0_86 = arith.constant 0 : index
    %333 = vector.load %arg2[%c0_85, %c0_86] : memref<24x192xf32, #tpu.memory_space<vmem>>, vector<24x192xf32>
    tpu.vector_store %arg2[%c0_85, %c0_86], %332 {strides = array<i32>} : memref<24x192xf32, #tpu.memory_space<vmem>>, vector<24x192xf32>,
    %cst_87 = arith.constant dense<0.000000e+00> : vector<6x192xf32>
    %334 = tpu.matmul %316, %327, %cst_87 {dimension_numbers = #tpu.dot_dimension_numbers<[1], [0], [0], [1], [0, 0, 1, 1], [], []>} : vector<6x32xbf16>, vector<32x192xbf16>, vector<6x192xf32> -> vector<6x192xf32>
    %c0_88 = arith.constant 0 : index
    %c0_89 = arith.constant 0 : index
    %335 = vector.load %arg2[%c0_88, %c0_89] : memref<24x192xf32, #tpu.memory_space<vmem>>, vector<6x192xf32>
    tpu.vector_store %arg2[%c0_88, %c0_89], %334 {strides = array<i32>} : memref<24x192xf32, #tpu.memory_space<vmem>>, vector<6x192xf32>,
    %cst_90 = arith.constant dense<0.000000e+00> : vector<6x192xf32>
    %336 = tpu.matmul %316, %329, %cst_90 {dimension_numbers = #tpu.dot_dimension_numbers<[1], [0], [0], [1], [0, 0, 1, 1], [], []>} : vector<6x32xbf16>, vector<32x192xbf16>, vector<6x192xf32> -> vector<6x192xf32>
    %c8 = arith.constant 8 : index
    %c0_91 = arith.constant 0 : index
    %337 = vector.load %arg2[%c8, %c0_91] : memref<24x192xf32, #tpu.memory_space<vmem>>, vector<6x192xf32>
    tpu.vector_store %arg2[%c8, %c0_91], %336 {strides = array<i32>} : memref<24x192xf32, #tpu.memory_space<vmem>>, vector<6x192xf32>,
    %cst_92 = arith.constant dense<0.000000e+00> : vector<4x192xf32>
    %338 = tpu.matmul %325, %331, %cst_92 {dimension_numbers = #tpu.dot_dimension_numbers<[1], [0], [0], [1], [0, 0, 1, 1], [], []>} : vector<4x32xbf16>, vector<32x192xbf16>, vector<4x192xf32> -> vector<4x192xf32>
    %c16_93 = arith.constant 16 : index
    %c0_94 = arith.constant 0 : index
    %339 = vector.load %arg2[%c16_93, %c0_94] : memref<24x192xf32, #tpu.memory_space<vmem>>, vector<4x192xf32>
    tpu.vector_store %arg2[%c16_93, %c0_94], %338 {strides = array<i32>} : memref<24x192xf32, #tpu.memory_space<vmem>>, vector<4x192xf32>,
    return
  }
}

module attributes {stable_mosaic.version = 11 : i64} {
  func.func @_query_kernel(%arg0: memref<8x3xi32, #tpu.memory_space<vmem>>, %arg1: memref<24x192xf32, #tpu.memory_space<vmem>>, %arg2: memref<280x192xf32, #tpu.memory_space<vmem>>, %arg3: memref<8x2xf32, #tpu.memory_space<vmem>>) attributes {dimension_semantics = [], scalar_prefetch = 0 : i64, scratch_operands = 0 : i64, tpu.core_type = #tpu.core_type<tc>} {
    %c0 = arith.constant 0 : index
    %c0_0 = arith.constant 0 : index
    %0 = vector.load %arg0[%c0, %c0_0] : memref<8x3xi32, #tpu.memory_space<vmem>>, vector<8x3xi32>
    %1 = tpu.iota {dimensions = array<i32: 1>} : vector<8x24xi32>
    %2 = vector.extract_strided_slice %0 {offsets = [0, 0], sizes = [8, 1], strides = [1, 1]} : vector<8x3xi32> to vector<8x1xi32>
    %3 = vector.broadcast %2 : vector<8x1xi32> to vector<8x24xi32>
    %4 = arith.cmpi eq, %1, %3 : vector<8x24xi32>
    %5 = vector.extract_strided_slice %0 {offsets = [0, 1], sizes = [8, 1], strides = [1, 1]} : vector<8x3xi32> to vector<8x1xi32>
    %c8_i32 = arith.constant 8 : i32
    %6 = vector.broadcast %c8_i32 : i32 to vector<8x1xi32>
    %7 = arith.addi %5, %6 : vector<8x1xi32>
    %8 = vector.broadcast %7 : vector<8x1xi32> to vector<8x24xi32>
    %9 = arith.cmpi eq, %1, %8 : vector<8x24xi32>
    %10 = arith.ori %4, %9 : vector<8x24xi1>
    %11 = vector.extract_strided_slice %0 {offsets = [0, 2], sizes = [8, 1], strides = [1, 1]} : vector<8x3xi32> to vector<8x1xi32>
    %c16_i32 = arith.constant 16 : i32
    %12 = vector.broadcast %c16_i32 : i32 to vector<8x1xi32>
    %13 = arith.addi %11, %12 : vector<8x1xi32>
    %14 = vector.broadcast %13 : vector<8x1xi32> to vector<8x24xi32>
    %15 = arith.cmpi eq, %1, %14 : vector<8x24xi32>
    %16 = arith.ori %10, %15 : vector<8x24xi1>
    %17 = arith.extui %16 : vector<8x24xi1> to vector<8x24xi32>
    %18 = arith.sitofp %17 : vector<8x24xi32> to vector<8x24xf32>
    %19 = arith.truncf %18 : vector<8x24xf32> to vector<8x24xbf16>
    %c0_1 = arith.constant 0 : index
    %c0_2 = arith.constant 0 : index
    %20 = vector.load %arg1[%c0_1, %c0_2] : memref<24x192xf32, #tpu.memory_space<vmem>>, vector<24x192xf32>
    %21 = arith.truncf %20 : vector<24x192xf32> to vector<24x192xbf16>
    %cst = arith.constant dense<0.000000e+00> : vector<8x192xf32>
    %22 = tpu.matmul %19, %21, %cst {dimension_numbers = #tpu.dot_dimension_numbers<[1], [0], [0], [1], [0, 0, 1, 1], [], []>} : vector<8x24xbf16>, vector<24x192xbf16>, vector<8x192xf32> -> vector<8x192xf32>
    %c0_3 = arith.constant 0 : index
    %c0_4 = arith.constant 0 : index
    %23 = vector.load %arg2[%c0_3, %c0_4] : memref<280x192xf32, #tpu.memory_space<vmem>>, vector<1x192xf32>
    %24 = vector.broadcast %23 : vector<1x192xf32> to vector<8x192xf32>
    %25 = arith.addf %22, %24 : vector<8x192xf32>
    %cst_5 = arith.constant 0.000000e+00 : f32
    %26 = vector.broadcast %cst_5 : f32 to vector<8x192xf32>
    %27 = arith.maximumf %25, %26 : vector<8x192xf32>
    %c8 = arith.constant 8 : index
    %c0_6 = arith.constant 0 : index
    %28 = vector.load %arg2[%c8, %c0_6] : memref<280x192xf32, #tpu.memory_space<vmem>>, vector<192x64xf32>
    %29 = arith.truncf %28 : vector<192x64xf32> to vector<192x64xbf16>
    %30 = arith.truncf %27 : vector<8x192xf32> to vector<8x192xbf16>
    %cst_7 = arith.constant dense<0.000000e+00> : vector<8x64xf32>
    %31 = tpu.matmul %30, %29, %cst_7 {dimension_numbers = #tpu.dot_dimension_numbers<[1], [0], [0], [1], [0, 0, 1, 1], [], []>} : vector<8x192xbf16>, vector<192x64xbf16>, vector<8x64xf32> -> vector<8x64xf32>
    %c200 = arith.constant 200 : index
    %c0_8 = arith.constant 0 : index
    %32 = vector.load %arg2[%c200, %c0_8] : memref<280x192xf32, #tpu.memory_space<vmem>>, vector<1x64xf32>
    %33 = vector.broadcast %32 : vector<1x64xf32> to vector<8x64xf32>
    %34 = arith.addf %31, %33 : vector<8x64xf32>
    %cst_9 = arith.constant 0.000000e+00 : f32
    %35 = vector.broadcast %cst_9 : f32 to vector<8x64xf32>
    %36 = arith.maximumf %34, %35 : vector<8x64xf32>
    %c208 = arith.constant 208 : index
    %c0_10 = arith.constant 0 : index
    %37 = vector.load %arg2[%c208, %c0_10] : memref<280x192xf32, #tpu.memory_space<vmem>>, vector<64x2xf32>
    %38 = arith.truncf %37 : vector<64x2xf32> to vector<64x2xbf16>
    %39 = arith.truncf %36 : vector<8x64xf32> to vector<8x64xbf16>
    %cst_11 = arith.constant dense<0.000000e+00> : vector<8x2xf32>
    %40 = tpu.matmul %39, %38, %cst_11 {dimension_numbers = #tpu.dot_dimension_numbers<[1], [0], [0], [1], [0, 0, 1, 1], [], []>} : vector<8x64xbf16>, vector<64x2xbf16>, vector<8x2xf32> -> vector<8x2xf32>
    %c272 = arith.constant 272 : index
    %c0_12 = arith.constant 0 : index
    %41 = vector.load %arg2[%c272, %c0_12] : memref<280x192xf32, #tpu.memory_space<vmem>>, vector<1x2xf32>
    %42 = vector.broadcast %41 : vector<1x2xf32> to vector<8x2xf32>
    %43 = arith.addf %40, %42 : vector<8x2xf32>
    %c0_13 = arith.constant 0 : index
    %c0_14 = arith.constant 0 : index
    %44 = vector.load %arg3[%c0_13, %c0_14] : memref<8x2xf32, #tpu.memory_space<vmem>>, vector<8x2xf32>
    tpu.vector_store %arg3[%c0_13, %c0_14], %43 {strides = array<i32>} : memref<8x2xf32, #tpu.memory_space<vmem>>, vector<8x2xf32>,
    return
  }
}

</mosaic_0001>

<llo_original>
// kernel: ae_forward.3
$region0: #{ae_forward.3}
  #allocation0 [shape = 'u32[]', space=smem, size = 0x4, offset = 0x4, fixed_abs, tag = 'smem constant byte address 0x4 - core index']
  #allocation1 [shape = 'u32[72,128]{1,0:T(1,128)}', space=vmem, size = 0x9000, scoped, tag = 'internal scratch']
  %s0 = inlined_call_operand.vmem [shape: s32[8,3], index: 0, kind: input, shape index: {}]
  %s1 = inlined_call_operand.vmem [shape: f32[24,192], index: 1, kind: input, shape index: {}]
  %s2 = inlined_call_operand.vmem [shape: f32[280,192], index: 2, kind: input, shape index: {}]
  %s3 = inlined_call_operand.vmem [shape: f32[8,2], index: 3, kind: output, shape index: {}]
  %s4 = sld [smem:[#allocation0]]
  $region22: #{ae_forward.3} parent=0
    _
  %s6 = ssub.s32 1, %s4
  %s7 = scalar_select 0, %s6, %s4
  // Predicated region
  $region2: #{ae_forward.3} parent=0 // pred_check
    _
  $region3: #{ae_forward.3} parent=0 // pred_check_branch
    %9 = sbr.rel (0) target = $region5
  $region4: #{ae_forward.3} parent=0 // pred_region
    _
  $region5: #{ae_forward.3} parent=0 // pred_fallthru
    _
  // Predicated region
  $region6: #{ae_forward.3} parent=0 // pred_check
    _
  $region7: #{ae_forward.3} parent=0 // pred_check_branch
    %11 = sbr.rel (0) target = $region9
  $region8: #{ae_forward.3} parent=0 // pred_region
    _
  $region9: #{ae_forward.3} parent=0 // pred_fallthru
    _
  // Predicated region
  $region10: #{ae_forward.3} parent=0 // pred_check
    _
  $region11: #{ae_forward.3} parent=0 // pred_check_branch
    %13 = sbr.rel (0) target = $region13
  $region12: #{ae_forward.3} parent=0 // pred_region
    _
  $region13: #{ae_forward.3} parent=0 // pred_fallthru
    _
  %v15 = vld [vmem:[%s0] sm:$0xff]
  %v16 = vlaneseq
  %v17 = vand.u32 %v16, 127
  %18 = vset.pattern.permute.xlu0 0
  %19 = vperm.xlu0 %18, %v15
  %v20 = vpop.permute.xlu0 %19
  %vm21 = vcmp.eq.s32.totalorder %v17, %v20
  %v22 = vadd.s32 %v15, 8
  %23 = vset.pattern.permute.xlu0 1
  %24 = vperm.xlu0 %23, %v22
  %v25 = vpop.permute.xlu0 %24
  %vm26 = vcmp.eq.s32.totalorder %v17, %v25
  %vm27 = vmor %vm21, %vm26
  %v28 = vadd.s32 %v15, 16
  %29 = vset.pattern.permute.xlu0 2
  %30 = vperm.xlu0 %29, %v28
  %v31 = vpop.permute.xlu0 %30
  %vm32 = vcmp.eq.s32.totalorder %v17, %v31
  %vm33 = vmor %vm27, %vm32
  %v34 = vsel %vm33, 1, 0
  %v35 = vcvt.s32.f32 %v34
  %v36 = vpack.c.bf16 %v35, %v35
  %v37 = vld [vmem:[%s1] sm:$0xff]
  %v38 = vld [vmem:[%s1 + $0x8] sm:$0xff]
  %v39 = vld [vmem:[%s1 + $0x10] sm:$0xff]
  %v40 = vld [vmem:[%s1 + $0x18] sm:$0xff]
  %v41 = vld [vmem:[%s1 + $0x20] sm:$0xff]
  %v42 = vld [vmem:[%s1 + $0x28] sm:$0xff]
  %v43 = vpack.c.bf16 %v39, %v37
  %v44 = vpack.c.bf16 %v40, %v38
  %v45 = vpack.c.bf16 %v41, %v41
  %v46 = vpack.c.bf16 %v42, %v42
  %v47 = vld [vmem:[%s2] ss:$8 sm:$0x3]
  %v49 = vperm.slane %v47, 0
  %v50 = vperm.slane %v47, 1
  %vm53 = vcmask 195584
  %v55 = vsel %vm53, %v36, 0
  %vm57 = vcmask 1043456
  %v59 = vsel %vm57, %v45, 0
  %v62 = vsel %vm57, %v46, 0
  %64 = vmatpush.bf16.msra.mxu0 0
  %65 = vmatpush.bf16.msra.mxu0 0
  %66 = vmatpush.bf16.msra.mxu0 0
  %67 = vmatpush.bf16.msra.mxu0 0
  %68 = vmatpush.bf16.msra.mxu0 0
  %69 = vmatpush.bf16.msra.mxu0 0
  %70 = vmatpush.bf16.msra.mxu0 %v59
  %71 = vmatpush.bf16.msra.mxu0 %v43
  %72 = vmatmul.bf16.gmra.mxu0 %v55
  %v73 = vpop.f32.mrf.mxu0
  %v74 = vadd.f32 %v49, %v73
  %v75 = vpop.f32.mrf.mxu0
  %76 = vdwg.mxu0
  %77 = vmatpush.bf16.msra.mxu0 0
  %78 = vmatpush.bf16.msra.mxu0 0
  %79 = vmatpush.bf16.msra.mxu0 0
  %80 = vmatpush.bf16.msra.mxu0 0
  %81 = vmatpush.bf16.msra.mxu0 0
  %82 = vmatpush.bf16.msra.mxu0 0
  %83 = vmatpush.bf16.msra.mxu0 %v62
  %84 = vmatpush.bf16.msra.mxu0 %v44
  %85 = vmatmul.bf16.gmra.mxu0 %v55
  %v86 = vpop.f32.mrf.mxu0
  %v87 = vadd.f32 %v50, %v86
  %v88 = vpop.f32.mrf.mxu0
  %89 = vdwg.mxu0
  %v90 = vmax.f32 %v74, 0.0
  %v91 = vmax.f32 %v87, 0.0
  %v92 = vld [vmem:[%s2 + $0x10] sm:$0xff]
  %v93 = vld [vmem:[%s2 + $0x20] sm:$0xff]
  %v94 = vld [vmem:[%s2 + $0x30] sm:$0xff]
  %v95 = vld [vmem:[%s2 + $0x40] sm:$0xff]
  %v96 = vld [vmem:[%s2 + $0x50] sm:$0xff]
  %v97 = vld [vmem:[%s2 + $0x60] sm:$0xff]
  %v98 = vld [vmem:[%s2 + $0x70] sm:$0xff]
  %v99 = vld [vmem:[%s2 + $0x80] sm:$0xff]
  %v100 = vld [vmem:[%s2 + $0x90] sm:$0xff]
  %v101 = vld [vmem:[%s2 + $0xa0] sm:$0xff]
  %v102 = vld [vmem:[%s2 + $0xb0] sm:$0xff]
  %v103 = vld [vmem:[%s2 + $0xc0] sm:$0xff]
  %v104 = vld [vmem:[%s2 + $0xd0] sm:$0xff]
  %v105 = vld [vmem:[%s2 + $0xe0] sm:$0xff]
  %v106 = vld [vmem:[%s2 + $0xf0] sm:$0xff]
  %v107 = vld [vmem:[%s2 + $0x100] sm:$0xff]
  %v108 = vld [vmem:[%s2 + $0x110] sm:$0xff]
  %v109 = vld [vmem:[%s2 + $0x120] sm:$0xff]
  %v110 = vld [vmem:[%s2 + $0x130] sm:$0xff]
  %v111 = vld [vmem:[%s2 + $0x140] sm:$0xff]
  %v112 = vld [vmem:[%s2 + $0x150] sm:$0xff]
  %v113 = vld [vmem:[%s2 + $0x160] sm:$0xff]
  %v114 = vld [vmem:[%s2 + $0x170] sm:$0xff]
  %v115 = vld [vmem:[%s2 + $0x180] sm:$0xff]
  %v116 = vpack.c.bf16 %v93, %v92
  %v117 = vpack.c.bf16 %v95, %v94
  %v118 = vpack.c.bf16 %v97, %v96
  %v119 = vpack.c.bf16 %v99, %v98
  %v120 = vpack.c.bf16 %v101, %v100
  %v121 = vpack.c.bf16 %v103, %v102
  %v122 = vpack.c.bf16 %v105, %v104
  %v123 = vpack.c.bf16 %v107, %v106
  %v124 = vpack.c.bf16 %v109, %v108
  %v125 = vpack.c.bf16 %v111, %v110
  %v126 = vpack.c.bf16 %v113, %v112
  %v127 = vpack.c.bf16 %v115, %v114
  %v128 = vpack.c.bf16 %v90, %v90
  %v129 = vpack.c.bf16 %v91, %v91
  %v130 = vld [vmem:[%s2 + $0x190] ss:$0 sm:$0xff]
  %vm131 = vcmask 523264
  %v133 = vsel %vm131, %v129, 0
  %135 = vmatpush.bf16.msra.mxu0 %v123
  %136 = vmatpush.bf16.msra.mxu0 %v122
  %137 = vmatpush.bf16.msra.mxu0 %v121
  %138 = vmatpush.bf16.msra.mxu0 %v120
  %139 = vmatpush.bf16.msra.mxu0 %v119
  %140 = vmatpush.bf16.msra.mxu0 %v118
  %141 = vmatpush.bf16.msra.mxu0 %v117
  %142 = vmatpush.bf16.msra.mxu0 %v116
  %143 = vmatmul.bf16.gmra.mxu0 %v128
  %v144 = vpop.f32.mrf.mxu0
  %v145 = vadd.f32 %v130, %v144
  %v146 = vpop.f32.mrf.mxu0
  %147 = vdwg.mxu0
  %148 = vmatpush.bf16.msra.mxu0 0
  %149 = vmatpush.bf16.msra.mxu0 0
  %150 = vmatpush.bf16.msra.mxu0 0
  %151 = vmatpush.bf16.msra.mxu0 0
  %152 = vmatpush.bf16.msra.mxu0 %v127
  %153 = vmatpush.bf16.msra.mxu0 %v126
  %154 = vmatpush.bf16.msra.mxu0 %v125
  %155 = vmatpush.bf16.msra.mxu0 %v124
  %156 = vmatmul.bf16.gmra.mxu0 %v133
  %v157 = vpop.f32.mrf.mxu0
  %v158 = vadd.f32 %v145, %v157
  %v159 = vpop.f32.mrf.mxu0
  %160 = vdwg.mxu0
  %v161 = vmax.f32 %v158, 0.0
  %v162 = vld [vmem:[%s2 + $0x1a0] sm:$0xff]
  %v163 = vld [vmem:[%s2 + $0x1b0] sm:$0xff]
  %v164 = vld [vmem:[%s2 + $0x1c0] sm:$0xff]
  %v165 = vld [vmem:[%s2 + $0x1d0] sm:$0xff]
  %v166 = vld [vmem:[%s2 + $0x1e0] sm:$0xff]
  %v167 = vld [vmem:[%s2 + $0x1f0] sm:$0xff]
  %v168 = vld [vmem:[%s2 + $0x200] sm:$0xff]
  %v169 = vld [vmem:[%s2 + $0x210] sm:$0xff]
  %v170 = vpack.c.bf16 %v163, %v162
  %v171 = vpack.c.bf16 %v165, %v164
  %v172 = vpack.c.bf16 %v167, %v166
  %v173 = vpack.c.bf16 %v169, %v168
  %v174 = vpack.c.bf16 %v161, %v161
  %v175 = vld [vmem:[%s2 + $0x220] ss:$0 sm:$0xff]
  %v177 = vsel %vm131, %v174, 0
  %179 = vmatpush.bf16.msra.mxu0 0
  %180 = vmatpush.bf16.msra.mxu0 0
  %181 = vmatpush.bf16.msra.mxu0 0
  %182 = vmatpush.bf16.msra.mxu0 0
  %183 = vmatpush.bf16.msra.mxu0 %v173
  %184 = vmatpush.bf16.msra.mxu0 %v172
  %185 = vmatpush.bf16.msra.mxu0 %v171
  %186 = vmatpush.bf16.msra.mxu0 %v170
  %187 = vmatmul.bf16.gmra.mxu0 %v177
  %v188 = vpop.f32.mrf.mxu0
  %v189 = vadd.f32 %v175, %v188
  %v190 = vpop.f32.mrf.mxu0
  %191 = vdwg.mxu0
  %vm192 = vcmask 15360
  %193 = vst.msk [vmem:[%s3] sm:$0xff] %vm192, %v189
  // Predicated region
  $region14: #{ae_forward.3} parent=0 // pred_check
    _
  $region15: #{ae_forward.3} parent=0 // pred_check_branch
    %195 = sbr.rel (0) target = $region17
  $region16: #{ae_forward.3} parent=0 // pred_region
    _
  $region17: #{ae_forward.3} parent=0 // pred_fallthru
    _
  // Predicated region
  $region18: #{ae_forward.3} parent=0 // pred_check
    _
  $region19: #{ae_forward.3} parent=0 // pred_check_branch
    %197 = sbr.rel (0) target = $region21
  $region20: #{ae_forward.3} parent=0 // pred_region
    _
  $region21: #{ae_forward.3} parent=0 // pred_fallthru
    _

// kernel: ae_forward.2
$region0: #{ae_forward.2}
  #allocation0 [shape = 'u32[]', space=smem, size = 0x4, offset = 0x4, fixed_abs, tag = 'smem constant byte address 0x4 - core index']
  #allocation1 [shape = 'u32[72,128]{1,0:T(1,128)}', space=vmem, size = 0x9000, scoped, tag = 'internal scratch']
  %s0 = inlined_call_operand.vmem [shape: f32[32,44], index: 0, kind: input, shape index: {}]
  %s1 = inlined_call_operand.vmem [shape: f32[216,192], index: 1, kind: input, shape index: {}]
  %s2 = inlined_call_operand.vmem [shape: f32[24,192], index: 2, kind: output, shape index: {}]
  %s3 = sld [smem:[#allocation0]]
  $region18: #{ae_forward.2} parent=0
    _
  %s5 = ssub.s32 1, %s3
  %s6 = scalar_select 0, %s5, %s3
  // Predicated region
  $region2: #{ae_forward.2} parent=0 // pred_check
    _
  $region3: #{ae_forward.2} parent=0 // pred_check_branch
    %8 = sbr.rel (0) target = $region5
  $region4: #{ae_forward.2} parent=0 // pred_region
    _
  $region5: #{ae_forward.2} parent=0 // pred_fallthru
    _
  // Predicated region
  $region6: #{ae_forward.2} parent=0 // pred_check
    _
  $region7: #{ae_forward.2} parent=0 // pred_check_branch
    %10 = sbr.rel (0) target = $region9
  $region8: #{ae_forward.2} parent=0 // pred_region
    _
  $region9: #{ae_forward.2} parent=0 // pred_fallthru
    _
  %v12 = vlaneseq
  %v13 = vand.u32 %v12, 127
  %vm14 = vcmp.ge.s32.totalorder %v13, 0
  %vm15 = vcmp.lt.s32.totalorder %v13, 16
  %vm16 = vmand %vm14, %vm15
  %v17 = vsel %vm16, 1, 0
  %v18 = vcvt.s32.f32 %v17
  %vm19 = vcmp.ge.s32.totalorder %v13, 16
  %vm20 = vcmp.lt.s32.totalorder %v13, 32
  %vm21 = vmand %vm19, %vm20
  %v22 = vsel %vm21, 1, 0
  %v23 = vcvt.s32.f32 %v22
  %v24 = vld [vmem:[%s0] sm:$0xff]
  %v25 = vld [vmem:[%s0 + $0x8] sm:$0xf]
  %v26 = vld [vmem:[%s0 + $0x10] sm:$0x3f]
  %v27 = vld [vmem:[%s0 + $0x18] sm:$0xf]
  %v28 = vld [vmem:[%s1] sm:$0xff]
  %v29 = vld [vmem:[%s1 + $0x10] sm:$0xff]
  %v30 = vld [vmem:[%s1 + $0x20] sm:$0xff]
  %v31 = vld [vmem:[%s1 + $0x30] sm:$0xff]
  %v32 = vpack.c.bf16 %v29, %v28
  %v33 = vpack.c.bf16 %v31, %v30
  %v34 = vld [vmem:[%s1 + $0x40] ss:$0 sm:$0xff]
  %v35 = vpack.c.bf16 %v25, %v24
  %vm36 = vcmask 261120
  %v38 = vsel %vm36, %v35, 0
  %40 = vmatpush.bf16.msra.mxu0 0
  %41 = vmatpush.bf16.msra.mxu0 0
  %42 = vmatpush.bf16.msra.mxu0 0
  %43 = vmatpush.bf16.msra.mxu0 0
  %44 = vmatpush.bf16.msra.mxu0 0
  %45 = vmatpush.bf16.msra.mxu0 0
  %46 = vmatpush.bf16.msra.mxu0 %v33
  %47 = vmatpush.bf16.msra.mxu0 %v32
  %48 = vmatmul.bf16.gmra.mxu0 %v38
  %v49 = vpop.f32.mrf.mxu0
  %v50 = vadd.f32 0.0, %v49
  %v51 = vpop.f32.mrf.mxu0
  %v52 = vadd.f32 0.0, %v51
  %53 = vdwg.mxu0
  %56 = vrot.lane.b32.xlu0 %v50, 96
  %v57 = vpop.permute.xlu0 %56
  %58 = vrot.lane.b32.xlu0 %v52, 96
  %v59 = vpop.permute.xlu0 %58
  %62 = vxpose.xlu0.b32.start [1/16] %v57, 128
  %63 = vxpose.xlu0.b32.cont [2/16] %v59, 128
  %64 = vxpose.xlu0.b32.cont [3/16] 0.0, 128
  %65 = vxpose.xlu0.b32.cont [4/16] 0.0, 128
  %66 = vxpose.xlu0.b32.cont [5/16] 0.0, 128
  %67 = vxpose.xlu0.b32.cont [6/16] 0.0, 128
  %68 = vxpose.xlu0.b32.cont [7/16] 0.0, 128
  %69 = vxpose.xlu0.b32.cont [8/16] 0.0, 128
  %70 = vxpose.xlu0.b32.cont [9/16] 0.0, 128
  %71 = vxpose.xlu0.b32.cont [10/16] 0.0, 128
  %72 = vxpose.xlu0.b32.cont [11/16] 0.0, 128
  %73 = vxpose.xlu0.b32.cont [12/16] 0.0, 128
  %74 = vxpose.xlu0.b32.cont [13/16] 0.0, 128
  %75 = vxpose.xlu0.b32.cont [14/16] 0.0, 128
  %76 = vxpose.xlu0.b32.cont [15/16] 0.0, 128
  %77 = vxpose.xlu0.b32.end [16/16] 0.0, 128
  %v78 = vpop.trf.xlu0
  %v79 = vpop.trf.xlu0
  %v80 = vpop.trf.xlu0
  %v81 = vpop.trf.xlu0
  %v82 = vpop.trf.xlu0
  %v83 = vpop.trf.xlu0
  %v84 = vpop.trf.xlu0
  %v85 = vpop.trf.xlu0
  %v86 = vpop.trf.xlu0
  %v87 = vpop.trf.xlu0
  %v88 = vpop.trf.xlu0
  %v89 = vpop.trf.xlu0
  %v90 = vpop.trf.xlu0
  %v91 = vpop.trf.xlu0
  %v92 = vpop.trf.xlu0
  %v93 = vpop.trf.xlu0
  %v94 = vperm.slane %v78, 0
  %v95 = vperm.slane %v78, 1
  %vm96 = vcmask 1043456
  %v97 = vsel %vm96, %v94, %v95
  %v98 = vrot.slane %v50, 4
  %v99 = vrot.slane %v52, 4
  %v100 = vsel %vm96, %v98, %v99
  %101 = vrot.lane.b32.xlu0 %v98, 127
  %v102 = vpop.permute.xlu0 %101
  %103 = vrot.lane.b32.xlu0 %v100, 127
  %v104 = vpop.permute.xlu0 %103
  %v106 = vsel %vm96, %v52, %v102
  %v109 = vrot.slane %v24, 4
  %v110 = vrot.slane %v25, 4
  %v111 = vsel %vm96, %v109, %v110
  %v114 = vsel %vm96, %v25, %v109
  %115 = vset.pattern.permute.xlu0 34
  %116 = vperm.xlu0 %115, %v50
  %v117 = vpop.permute.xlu0 %116
  %120 = vset.pattern.permute.xlu0 34
  %121 = vperm.xlu0 %120, %v106
  %v122 = vpop.permute.xlu0 %121
  %124 = vset.pattern.permute.xlu0 34
  %125 = vperm.xlu0 %124, %v104
  %v126 = vpop.permute.xlu0 %125
  %v128 = vadd.f32 %v117, %v94
  %v129 = vadd.f32 %v122, %v97
  %v130 = vadd.f32 %v126, %v95
  %vm131 = vcmp.gt.f32.partialorder %v128, 0.0
  %vm132 = vcmp.gt.f32.partialorder %v129, 0.0
  %vm133 = vcmp.gt.f32.partialorder %v130, 0.0
  %v134 = vmul.f32 %v128, 0.2
  %v135 = vmul.f32 %v129, 0.2
  %v136 = vmul.f32 %v130, 0.2
  %v137 = vsel %vm131, %v128, %v134
  %v138 = vsel %vm132, %v129, %v135
  %v139 = vsel %vm133, %v130, %v136
  %vm140 = vcmp.gt.f32.partialorder %v24, 0.0
  %vm141 = vcmp.gt.f32.partialorder %v114, 0.0
  %vm142 = vcmp.gt.f32.partialorder %v111, 0.0
  %146 = vrot.lane.b32.xlu0 %v137, 32
  %v147 = vpop.permute.xlu0 %146
  %148 = vrot.lane.b32.xlu0 %v138, 32
  %v149 = vpop.permute.xlu0 %148
  %150 = vrot.lane.b32.xlu0 %v139, 32
  %v151 = vpop.permute.xlu0 %150
  %v155 = vsel %vm140, %v147, -1e+30
  %v156 = vsel %vm141, %v149, -1e+30
  %v157 = vsel %vm142, %v151, -1e+30
  %vm158 = vcmask 359680
  %v159 = vsel %vm158, %v155, -inf
  %160 = vmax.xlane.f32.xlu0 %v159
  %v161 = vpop.xlane.xlu0 %160
  %v162 = vsel %vm158, %v156, -inf
  %163 = vmax.xlane.f32.xlu0 %v162
  %v164 = vpop.xlane.xlu0 %163
  %v165 = vsel %vm158, %v157, -inf
  %166 = vmax.xlane.f32.xlu0 %v165
  %v167 = vpop.xlane.xlu0 %166
  %v168 = vsub.f32 %v155, %v161
  %v169 = vsub.f32 %v156, %v164
  %v170 = vsub.f32 %v157, %v167
  %v171 = vmul.f32 %v168, 1.442695
  %v172 = vpow.pop %v171
  %v173 = vmul.f32 %v169, 1.442695
  %v174 = vpow.pop %v173
  %v175 = vmul.f32 %v170, 1.442695
  %v176 = vpow.pop %v175
  %v177 = vmul.f32 %v172, %v24
  %v178 = vmul.f32 %v174, %v114
  %v179 = vmul.f32 %v176, %v111
  %183 = vrot.lane.b32.xlu0 %v177, 96
  %v184 = vpop.permute.xlu0 %183
  %185 = vrot.lane.b32.xlu0 %v178, 96
  %v186 = vpop.permute.xlu0 %185
  %187 = vrot.lane.b32.xlu0 %v179, 96
  %v188 = vpop.permute.xlu0 %187
  %vm192 = vcmask 97280
  %v193 = vsel %vm192, %v184, 0.0
  %194 = vadd.xlane.f32.xlu0 %v193
  %v195 = vpop.xlane.xlu0 %194
  %v196 = vsel %vm192, %v186, 0.0
  %197 = vadd.xlane.f32.xlu0 %v196
  %v198 = vpop.xlane.xlu0 %197
  %v199 = vsel %vm192, %v188, 0.0
  %200 = vadd.xlane.f32.xlu0 %v199
  %v201 = vpop.xlane.xlu0 %200
  %v202 = vmax.f32 %v195, 1e-20
  %v203 = vmax.f32 %v198, 1e-20
  %v204 = vmax.f32 %v201, 1e-20
  %v205 = vrcp.pop %v202
  %v206 = vmul.f32 %v202, %v205
  %v207 = vsub.f32 1.0, %v206
  %v208 = vmul.f32 %v205, %v207
  %v209 = vadd.f32 %v205, %v208
  %vm210 = vweird.f32 %v202
  %vm211 = vweird.f32 %v205
  %vm212 = vmor %vm210, %vm211
  %v213 = vsel %vm212, %v205, %v209
  %v214 = vand.u32 2147483647, %v202
  %vm215 = vcmp.eq.f32.partialorder %v214, 8.507059e+37
  %v216 = vand.u32 %v202, 2147483648
  %v217 = vor.u32 1.1754944e-38, %v216
  %v218 = vsel %vm215, %v217, %v213
  %v219 = vmul.f32 %v177, %v218
  %v220 = vrcp.pop %v203
  %v221 = vmul.f32 %v203, %v220
  %v222 = vsub.f32 1.0, %v221
  %v223 = vmul.f32 %v220, %v222
  %v224 = vadd.f32 %v220, %v223
  %vm225 = vweird.f32 %v203
  %vm226 = vweird.f32 %v220
  %vm227 = vmor %vm225, %vm226
  %v228 = vsel %vm227, %v220, %v224
  %v229 = vand.u32 2147483647, %v203
  %vm230 = vcmp.eq.f32.partialorder %v229, 8.507059e+37
  %v231 = vand.u32 %v203, 2147483648
  %v232 = vor.u32 1.1754944e-38, %v231
  %v233 = vsel %vm230, %v232, %v228
  %v234 = vmul.f32 %v178, %v233
  %v235 = vrcp.pop %v204
  %v236 = vmul.f32 %v204, %v235
  %v237 = vsub.f32 1.0, %v236
  %v238 = vmul.f32 %v235, %v237
  %v239 = vadd.f32 %v235, %v238
  %vm240 = vweird.f32 %v204
  %vm241 = vweird.f32 %v235
  %vm242 = vmor %vm240, %vm241
  %v243 = vsel %vm242, %v235, %v239
  %v244 = vand.u32 2147483647, %v204
  %vm245 = vcmp.eq.f32.partialorder %v244, 8.507059e+37
  %v246 = vand.u32 %v204, 2147483648
  %v247 = vor.u32 1.1754944e-38, %v246
  %v248 = vsel %vm245, %v247, %v243
  %v249 = vmul.f32 %v179, %v248
  %v250 = vpack.c.bf16 %v234, %v219
  %v251 = vpack.c.bf16 %v249, %v249
  %v252 = vpack.c.bf16 %v52, %v50
  %255 = vrot.lane.b32.xlu0 %v250, 96
  %v256 = vpop.permute.xlu0 %255
  %257 = vrot.lane.b32.xlu0 %v251, 96
  %v258 = vpop.permute.xlu0 %257
  %v260 = vsel %vm192, %v256, 0
  %v263 = vsel %vm192, %v258, 0
  %vm265 = vcmask 1045504
  %v267 = vsel %vm265, %v252, 0
  %269 = vmatpush.bf16.msra.mxu0 0
  %270 = vmatpush.bf16.msra.mxu0 0
  %271 = vmatpush.bf16.msra.mxu0 0
  %272 = vmatpush.bf16.msra.mxu0 0
  %273 = vmatpush.bf16.msra.mxu0 0
  %274 = vmatpush.bf16.msra.mxu0 0
  %275 = vmatpush.bf16.msra.mxu0 0
  %276 = vmatpush.bf16.msra.mxu0 %v267
  %277 = vmatmul.bf16.gmra.mxu0 %v260
  %v278 = vpop.f32.mrf.mxu0
  %v279 = vadd.f32 0.0, %v278
  %v280 = vpop.f32.mrf.mxu0
  %v281 = vadd.f32 0.0, %v280
  %282 = vmatmul.bf16.gmra.mxu0 %v263
  %v283 = vpop.f32.mrf.mxu0
  %v284 = vadd.f32 0.0, %v283
  %v285 = vpop.f32.mrf.mxu0
  %286 = vdwg.mxu0
  %v287 = vmul.f32 %v279, %v18
  %v288 = vmul.f32 %v281, %v18
  %v289 = vadd.f32 %v34, %v287
  %v290 = vadd.f32 %v34, %v288
  %v291 = vmul.f32 %v281, %v23
  %v292 = vmul.f32 %v284, %v23
  %v295 = vrot.slane %v291, 4
  %v296 = vrot.slane %v292, 4
  %v297 = vsel %vm96, %v295, %v296
  %v300 = vadd.f32 %v289, %v297
  %v301 = vadd.f32 %v290, %v296
  %v302 = vld [vmem:[%s1 + $0x50] sm:$0xff]
  %v303 = vld [vmem:[%s1 + $0x60] sm:$0xff]
  %v304 = vld [vmem:[%s1 + $0x70] sm:$0xff]
  %v305 = vld [vmem:[%s1 + $0x80] sm:$0xff]
  %v306 = vpack.c.bf16 %v303, %v302
  %v307 = vpack.c.bf16 %v305, %v304
  %v308 = vld [vmem:[%s1 + $0x90] ss:$0 sm:$0xff]
  %v309 = vpack.c.bf16 %v301, %v300
  %v311 = vsel %vm36, %v309, 0
  %313 = vmatpush.bf16.msra.mxu0 0
  %314 = vmatpush.bf16.msra.mxu0 0
  %315 = vmatpush.bf16.msra.mxu0 0
  %316 = vmatpush.bf16.msra.mxu0 0
  %317 = vmatpush.bf16.msra.mxu0 0
  %318 = vmatpush.bf16.msra.mxu0 0
  %319 = vmatpush.bf16.msra.mxu0 %v307
  %320 = vmatpush.bf16.msra.mxu0 %v306
  %321 = vmatmul.bf16.gmra.mxu0 %v311
  %v322 = vpop.f32.mrf.mxu0
  %v323 = vadd.f32 0.0, %v322
  %v324 = vpop.f32.mrf.mxu0
  %v325 = vadd.f32 0.0, %v324
  %326 = vdwg.mxu0
  %v327 = vpack.c.bf16 %v26, %v26
  %330 = vrot.lane.b32.xlu0 %v306, 60
  %v331 = vpop.permute.xlu0 %330
  %332 = vrot.lane.b32.xlu0 %v307, 60
  %v333 = vpop.permute.xlu0 %332
  %v337 = vsel %vm36, %v327, 0
  %339 = vmatpush.bf16.msra.mxu0 0
  %340 = vmatpush.bf16.msra.mxu0 0
  %341 = vmatpush.bf16.msra.mxu0 0
  %342 = vmatpush.bf16.msra.mxu0 0
  %343 = vmatpush.bf16.msra.mxu0 0
  %344 = vmatpush.bf16.msra.mxu0 0
  %345 = vmatpush.bf16.msra.mxu0 %v333
  %346 = vmatpush.bf16.msra.mxu0 %v331
  %347 = vmatmul.bf16.gmra.mxu0 %v337
  %v348 = vpop.f32.mrf.mxu0
  %v349 = vadd.f32 0.0, %v348
  %v350 = vpop.f32.mrf.mxu0
  %351 = vdwg.mxu0
  %v352 = vpack.c.bf16 %v27, %v27
  %353 = vrot.lane.b32.xlu0 %v306, 58
  %v354 = vpop.permute.xlu0 %353
  %355 = vrot.lane.b32.xlu0 %v307, 58
  %v356 = vpop.permute.xlu0 %355
  %v360 = vsel %vm36, %v352, 0
  %362 = vmatpush.bf16.msra.mxu0 0
  %363 = vmatpush.bf16.msra.mxu0 0
  %364 = vmatpush.bf16.msra.mxu0 0
  %365 = vmatpush.bf16.msra.mxu0 0
  %366 = vmatpush.bf16.msra.mxu0 0
  %367 = vmatpush.bf16.msra.mxu0 0
  %368 = vmatpush.bf16.msra.mxu0 %v356
  %369 = vmatpush.bf16.msra.mxu0 %v354
  %370 = vmatmul.bf16.gmra.mxu0 %v360
  %v371 = vpop.f32.mrf.mxu0
  %v372 = vadd.f32 0.0, %v371
  %v373 = vpop.f32.mrf.mxu0
  %374 = vdwg.mxu0
  %377 = vrot.lane.b32.xlu0 %v323, 64
  %v378 = vpop.permute.xlu0 %377
  %379 = vrot.lane.b32.xlu0 %v325, 64
  %v380 = vpop.permute.xlu0 %379
  %383 = vxpose.xlu0.b32.start [1/16] %v378, 128
  %384 = vxpose.xlu0.b32.cont [2/16] %v380, 128
  %385 = vxpose.xlu0.b32.cont [3/16] 0.0, 128
  %386 = vxpose.xlu0.b32.cont [4/16] 0.0, 128
  %387 = vxpose.xlu0.b32.cont [5/16] 0.0, 128
  %388 = vxpose.xlu0.b32.cont [6/16] 0.0, 128
  %389 = vxpose.xlu0.b32.cont [7/16] 0.0, 128
  %390 = vxpose.xlu0.b32.cont [8/16] 0.0, 128
  %391 = vxpose.xlu0.b32.cont [9/16] 0.0, 128
  %392 = vxpose.xlu0.b32.cont [10/16] 0.0, 128
  %393 = vxpose.xlu0.b32.cont [11/16] 0.0, 128
  %394 = vxpose.xlu0.b32.cont [12/16] 0.0, 128
  %395 = vxpose.xlu0.b32.cont [13/16] 0.0, 128
  %396 = vxpose.xlu0.b32.cont [14/16] 0.0, 128
  %397 = vxpose.xlu0.b32.cont [15/16] 0.0, 128
  %398 = vxpose.xlu0.b32.end [16/16] 0.0, 128
  %v399 = vpop.trf.xlu0
  %v400 = vpop.trf.xlu0
  %v401 = vpop.trf.xlu0
  %v402 = vpop.trf.xlu0
  %v403 = vpop.trf.xlu0
  %v404 = vpop.trf.xlu0
  %v405 = vpop.trf.xlu0
  %v406 = vpop.trf.xlu0
  %v407 = vpop.trf.xlu0
  %v408 = vpop.trf.xlu0
  %v409 = vpop.trf.xlu0
  %v410 = vpop.trf.xlu0
  %v411 = vpop.trf.xlu0
  %v412 = vpop.trf.xlu0
  %v413 = vpop.trf.xlu0
  %v414 = vpop.trf.xlu0
  %v415 = vperm.slane %v399, 0
  %v416 = vperm.slane %v399, 1
  %v417 = vsel %vm265, %v415, %v416
  %v419 = vrot.slane %v349, 2
  %420 = vrot.lane.b32.xlu0 %v419, 127
  %v421 = vpop.permute.xlu0 %420
  %v423 = vsel %vm265, %v349, %v421
  %v425 = vrot.slane %v26, 2
  %v427 = vsel %vm265, %v26, %v425
  %429 = vset.pattern.permute.xlu0 0
  %430 = vperm.xlu0 %429, %v423
  %v431 = vpop.permute.xlu0 %430
  %433 = vset.pattern.permute.xlu0 0
  %434 = vperm.xlu0 %433, %v421
  %v435 = vpop.permute.xlu0 %434
  %v437 = vadd.f32 %v431, %v417
  %v438 = vadd.f32 %v435, %v416
  %vm439 = vcmp.gt.f32.partialorder %v437, 0.0
  %vm440 = vcmp.gt.f32.partialorder %v438, 0.0
  %v441 = vmul.f32 %v437, 0.2
  %v442 = vmul.f32 %v438, 0.2
  %v443 = vsel %vm439, %v437, %v441
  %v444 = vsel %vm440, %v438, %v442
  %vm445 = vcmp.gt.f32.partialorder %v427, 0.0
  %vm446 = vcmp.gt.f32.partialorder %v425, 0.0
  %449 = vrot.lane.b32.xlu0 %v443, 32
  %v450 = vpop.permute.xlu0 %449
  %451 = vrot.lane.b32.xlu0 %v444, 32
  %v452 = vpop.permute.xlu0 %451
  %v455 = vsel %vm445, %v450, -1e+30
  %v456 = vsel %vm446, %v452, -1e+30
  %v457 = vsel %vm158, %v455, -inf
  %458 = vmax.xlane.f32.xlu0 %v457
  %v459 = vpop.xlane.xlu0 %458
  %vm460 = vcmask 355584
  %v461 = vsel %vm460, %v456, -inf
  %462 = vmax.xlane.f32.xlu0 %v461
  %v463 = vpop.xlane.xlu0 %462
  %v464 = vsub.f32 %v455, %v459
  %v465 = vsub.f32 %v456, %v463
  %v466 = vmul.f32 %v464, 1.442695
  %v467 = vpow.pop %v466
  %v468 = vmul.f32 %v465, 1.442695
  %v469 = vpow.pop %v468
  %v470 = vmul.f32 %v467, %v427
  %v471 = vmul.f32 %v469, %v425
  %474 = vrot.lane.b32.xlu0 %v470, 96
  %v475 = vpop.permute.xlu0 %474
  %476 = vrot.lane.b32.xlu0 %v471, 96
  %v477 = vpop.permute.xlu0 %476
  %v480 = vsel %vm192, %v475, 0.0
  %481 = vadd.xlane.f32.xlu0 %v480
  %v482 = vpop.xlane.xlu0 %481
  %vm483 = vcmask 93184
  %v484 = vsel %vm483, %v477, 0.0
  %485 = vadd.xlane.f32.xlu0 %v484
  %v486 = vpop.xlane.xlu0 %485
  %v487 = vmax.f32 %v482, 1e-20
  %v488 = vmax.f32 %v486, 1e-20
  %v489 = vrcp.pop %v487
  %v490 = vmul.f32 %v487, %v489
  %v491 = vsub.f32 1.0, %v490
  %v492 = vmul.f32 %v489, %v491
  %v493 = vadd.f32 %v489, %v492
  %vm494 = vweird.f32 %v487
  %vm495 = vweird.f32 %v489
  %vm496 = vmor %vm494, %vm495
  %v497 = vsel %vm496, %v489, %v493
  %v498 = vand.u32 2147483647, %v487
  %vm499 = vcmp.eq.f32.partialorder %v498, 8.507059e+37
  %v500 = vand.u32 %v487, 2147483648
  %v501 = vor.u32 1.1754944e-38, %v500
  %v502 = vsel %vm499, %v501, %v497
  %v503 = vmul.f32 %v470, %v502
  %v504 = vrcp.pop %v488
  %v505 = vmul.f32 %v488, %v504
  %v506 = vsub.f32 1.0, %v505
  %v507 = vmul.f32 %v504, %v506
  %v508 = vadd.f32 %v504, %v507
  %vm509 = vweird.f32 %v488
  %vm510 = vweird.f32 %v504
  %vm511 = vmor %vm509, %vm510
  %v512 = vsel %vm511, %v504, %v508
  %v513 = vand.u32 2147483647, %v488
  %vm514 = vcmp.eq.f32.partialorder %v513, 8.507059e+37
  %v515 = vand.u32 %v488, 2147483648
  %v516 = vor.u32 1.1754944e-38, %v515
  %v517 = vsel %vm514, %v516, %v512
  %v518 = vmul.f32 %v471, %v517
  %v519 = vpack.c.bf16 %v518, %v503
  %v520 = vpack.c.bf16 %v325, %v323
  %522 = vrot.lane.b32.xlu0 %v519, 96
  %v523 = vpop.permute.xlu0 %522
  %v525 = vsel %vm192, %v523, 0
  %v528 = vsel %vm265, %v520, 0
  %530 = vmatpush.bf16.msra.mxu0 0
  %531 = vmatpush.bf16.msra.mxu0 0
  %532 = vmatpush.bf16.msra.mxu0 0
  %533 = vmatpush.bf16.msra.mxu0 0
  %534 = vmatpush.bf16.msra.mxu0 0
  %535 = vmatpush.bf16.msra.mxu0 0
  %536 = vmatpush.bf16.msra.mxu0 0
  %537 = vmatpush.bf16.msra.mxu0 %v528
  %538 = vmatmul.bf16.gmra.mxu0 %v525
  %v539 = vpop.f32.mrf.mxu0
  %v540 = vadd.f32 0.0, %v539
  %v541 = vpop.f32.mrf.mxu0
  %v542 = vadd.f32 0.0, %v541
  %543 = vdwg.mxu0
  %v544 = vmul.f32 %v540, %v18
  %v545 = vadd.f32 %v308, %v544
  %v546 = vmul.f32 %v540, %v23
  %v547 = vmul.f32 %v542, %v23
  %vm550 = vcmask 1041408
  %v551 = vrot.slane %v546, 6
  %v552 = vrot.slane %v547, 6
  %v553 = vsel %vm550, %v551, %v552
  %v555 = vadd.f32 %v545, %v553
  %v556 = vmax.f32 %v555, 0.0
  %557 = vrot.lane.b32.xlu0 %v323, 62
  %v558 = vpop.permute.xlu0 %557
  %559 = vrot.lane.b32.xlu0 %v325, 62
  %v560 = vpop.permute.xlu0 %559
  %563 = vxpose.xlu0.b32.start [1/16] %v558, 128
  %564 = vxpose.xlu0.b32.cont [2/16] %v560, 128
  %565 = vxpose.xlu0.b32.cont [3/16] 0.0, 128
  %566 = vxpose.xlu0.b32.cont [4/16] 0.0, 128
  %567 = vxpose.xlu0.b32.cont [5/16] 0.0, 128
  %568 = vxpose.xlu0.b32.cont [6/16] 0.0, 128
  %569 = vxpose.xlu0.b32.cont [7/16] 0.0, 128
  %570 = vxpose.xlu0.b32.cont [8/16] 0.0, 128
  %571 = vxpose.xlu0.b32.cont [9/16] 0.0, 128
  %572 = vxpose.xlu0.b32.cont [10/16] 0.0, 128
  %573 = vxpose.xlu0.b32.cont [11/16] 0.0, 128
  %574 = vxpose.xlu0.b32.cont [12/16] 0.0, 128
  %575 = vxpose.xlu0.b32.cont [13/16] 0.0, 128
  %576 = vxpose.xlu0.b32.cont [14/16] 0.0, 128
  %577 = vxpose.xlu0.b32.cont [15/16] 0.0, 128
  %578 = vxpose.xlu0.b32.end [16/16] 0.0, 128
  %v579 = vpop.trf.xlu0
  %v580 = vpop.trf.xlu0
  %v581 = vpop.trf.xlu0
  %v582 = vpop.trf.xlu0
  %v583 = vpop.trf.xlu0
  %v584 = vpop.trf.xlu0
  %v585 = vpop.trf.xlu0
  %v586 = vpop.trf.xlu0
  %v587 = vpop.trf.xlu0
  %v588 = vpop.trf.xlu0
  %v589 = vpop.trf.xlu0
  %v590 = vpop.trf.xlu0
  %v591 = vpop.trf.xlu0
  %v592 = vpop.trf.xlu0
  %v593 = vpop.trf.xlu0
  %v594 = vpop.trf.xlu0
  %v595 = vperm.slane %v579, 0
  %v596 = vperm.slane %v579, 1
  %v597 = vsel %vm96, %v595, %v596
  %v599 = vrot.slane %v372, 4
  %600 = vrot.lane.b32.xlu0 %v599, 127
  %v601 = vpop.permute.xlu0 %600
  %v603 = vsel %vm96, %v372, %v601
  %v605 = vrot.slane %v27, 4
  %v607 = vsel %vm96, %v27, %v605
  %609 = vset.pattern.permute.xlu0 0
  %610 = vperm.xlu0 %609, %v603
  %v611 = vpop.permute.xlu0 %610
  %v613 = vadd.f32 %v611, %v597
  %vm614 = vcmp.gt.f32.partialorder %v613, 0.0
  %v615 = vmul.f32 %v613, 0.2
  %v616 = vsel %vm614, %v613, %v615
  %vm617 = vcmp.gt.f32.partialorder %v607, 0.0
  %619 = vrot.lane.b32.xlu0 %v616, 32
  %v620 = vpop.permute.xlu0 %619
  %v622 = vsel %vm617, %v620, -1e+30
  %v623 = vsel %vm158, %v622, -inf
  %624 = vmax.xlane.f32.xlu0 %v623
  %v625 = vpop.xlane.xlu0 %624
  %v626 = vsub.f32 %v622, %v625
  %v627 = vmul.f32 %v626, 1.442695
  %v628 = vpow.pop %v627
  %v629 = vmul.f32 %v628, %v607
  %631 = vrot.lane.b32.xlu0 %v629, 96
  %v632 = vpop.permute.xlu0 %631
  %v634 = vsel %vm192, %v632, 0.0
  %635 = vadd.xlane.f32.xlu0 %v634
  %v636 = vpop.xlane.xlu0 %635
  %v637 = vmax.f32 %v636, 1e-20
  %v638 = vrcp.pop %v637
  %v639 = vmul.f32 %v637, %v638
  %v640 = vsub.f32 1.0, %v639
  %v641 = vmul.f32 %v638, %v640
  %v642 = vadd.f32 %v638, %v641
  %vm643 = vweird.f32 %v637
  %vm644 = vweird.f32 %v638
  %vm645 = vmor %vm643, %vm644
  %v646 = vsel %vm645, %v638, %v642
  %v647 = vand.u32 2147483647, %v637
  %vm648 = vcmp.eq.f32.partialorder %v647, 8.507059e+37
  %v649 = vand.u32 %v637, 2147483648
  %v650 = vor.u32 1.1754944e-38, %v649
  %v651 = vsel %vm648, %v650, %v646
  %v652 = vmul.f32 %v629, %v651
  %v653 = vpack.c.bf16 %v652, %v652
  %655 = vrot.lane.b32.xlu0 %v653, 96
  %v656 = vpop.permute.xlu0 %655
  %658 = vrot.lane.b32.xlu0 %v520, 96
  %v659 = vpop.permute.xlu0 %658
  %v661 = vsel %vm192, %v656, 0
  %v664 = vsel %vm265, %v659, 0
  %666 = vmatpush.bf16.msra.mxu0 0
  %667 = vmatpush.bf16.msra.mxu0 0
  %668 = vmatpush.bf16.msra.mxu0 0
  %669 = vmatpush.bf16.msra.mxu0 0
  %670 = vmatpush.bf16.msra.mxu0 0
  %671 = vmatpush.bf16.msra.mxu0 0
  %672 = vmatpush.bf16.msra.mxu0 0
  %673 = vmatpush.bf16.msra.mxu0 %v664
  %674 = vmatmul.bf16.gmra.mxu0 %v661
  %v675 = vpop.f32.mrf.mxu0
  %v676 = vadd.f32 0.0, %v675
  %v677 = vpop.f32.mrf.mxu0
  %678 = vdwg.mxu0
  %v679 = vmul.f32 %v676, %v18
  %681 = vrot.lane.b32.xlu0 %v679, 32
  %v682 = vpop.permute.xlu0 %681
  %v684 = vadd.f32 %v308, %v682
  %v685 = vmul.f32 %v676, %v23
  %v687 = vrot.slane %v685, 4
  %688 = vrot.lane.b32.xlu0 %v687, 32
  %v689 = vpop.permute.xlu0 %688
  %v691 = vadd.f32 %v684, %v689
  %v692 = vmax.f32 %v691, 0.0
  %v693 = vld [vmem:[%s1 + $0xa0] sm:$0xff]
  %v694 = vld [vmem:[%s1 + $0xb0] sm:$0xff]
  %v695 = vld [vmem:[%s1 + $0xc0] sm:$0xff]
  %v696 = vld [vmem:[%s1 + $0xd0] sm:$0xff]
  %v697 = vpack.c.bf16 %v694, %v693
  %v698 = vpack.c.bf16 %v696, %v695
  %v699 = vld [vmem:[%s1 + $0xe0] ss:$0 sm:$0xff]
  %700 = vmatpush.bf16.msra.mxu0 0
  %701 = vmatpush.bf16.msra.mxu0 0
  %702 = vmatpush.bf16.msra.mxu0 0
  %703 = vmatpush.bf16.msra.mxu0 0
  %704 = vmatpush.bf16.msra.mxu0 0
  %705 = vmatpush.bf16.msra.mxu0 0
  %706 = vmatpush.bf16.msra.mxu0 %v698
  %707 = vmatpush.bf16.msra.mxu0 %v697
  %708 = vmatmul.bf16.gmra.mxu0 %v311
  %v709 = vpop.f32.mrf.mxu0
  %v710 = vadd.f32 0.0, %v709
  %v711 = vpop.f32.mrf.mxu0
  %v712 = vadd.f32 0.0, %v711
  %713 = vdwg.mxu0
  %v714 = vpack.c.bf16 %v556, %v556
  %717 = vrot.lane.b32.xlu0 %v697, 60
  %v718 = vpop.permute.xlu0 %717
  %719 = vrot.lane.b32.xlu0 %v698, 60
  %v720 = vpop.permute.xlu0 %719
  %v724 = vsel %vm36, %v714, 0
  %726 = vmatpush.bf16.msra.mxu0 0
  %727 = vmatpush.bf16.msra.mxu0 0
  %728 = vmatpush.bf16.msra.mxu0 0
  %729 = vmatpush.bf16.msra.mxu0 0
  %730 = vmatpush.bf16.msra.mxu0 0
  %731 = vmatpush.bf16.msra.mxu0 0
  %732 = vmatpush.bf16.msra.mxu0 %v720
  %733 = vmatpush.bf16.msra.mxu0 %v718
  %734 = vmatmul.bf16.gmra.mxu0 %v724
  %v735 = vpop.f32.mrf.mxu0
  %v736 = vadd.f32 0.0, %v735
  %v737 = vpop.f32.mrf.mxu0
  %738 = vdwg.mxu0
  %v739 = vpack.c.bf16 %v692, %v692
  %741 = vrot.lane.b32.xlu0 %v739, 96
  %v742 = vpop.permute.xlu0 %741
  %743 = vrot.lane.b32.xlu0 %v697, 58
  %v744 = vpop.permute.xlu0 %743
  %745 = vrot.lane.b32.xlu0 %v698, 58
  %v746 = vpop.permute.xlu0 %745
  %v750 = vsel %vm36, %v742, 0
  %752 = vmatpush.bf16.msra.mxu0 0
  %753 = vmatpush.bf16.msra.mxu0 0
  %754 = vmatpush.bf16.msra.mxu0 0
  %755 = vmatpush.bf16.msra.mxu0 0
  %756 = vmatpush.bf16.msra.mxu0 0
  %757 = vmatpush.bf16.msra.mxu0 0
  %758 = vmatpush.bf16.msra.mxu0 %v746
  %759 = vmatpush.bf16.msra.mxu0 %v744
  %760 = vmatmul.bf16.gmra.mxu0 %v750
  %v761 = vpop.f32.mrf.mxu0
  %v762 = vadd.f32 0.0, %v761
  %v763 = vpop.f32.mrf.mxu0
  %764 = vdwg.mxu0
  %767 = vrot.lane.b32.xlu0 %v710, 64
  %v768 = vpop.permute.xlu0 %767
  %769 = vrot.lane.b32.xlu0 %v712, 64
  %v770 = vpop.permute.xlu0 %769
  %773 = vxpose.xlu0.b32.start [1/16] %v768, 128
  %774 = vxpose.xlu0.b32.cont [2/16] %v770, 128
  %775 = vxpose.xlu0.b32.cont [3/16] 0.0, 128
  %776 = vxpose.xlu0.b32.cont [4/16] 0.0, 128
  %777 = vxpose.xlu0.b32.cont [5/16] 0.0, 128
  %778 = vxpose.xlu0.b32.cont [6/16] 0.0, 128
  %779 = vxpose.xlu0.b32.cont [7/16] 0.0, 128
  %780 = vxpose.xlu0.b32.cont [8/16] 0.0, 128
  %781 = vxpose.xlu0.b32.cont [9/16] 0.0, 128
  %782 = vxpose.xlu0.b32.cont [10/16] 0.0, 128
  %783 = vxpose.xlu0.b32.cont [11/16] 0.0, 128
  %784 = vxpose.xlu0.b32.cont [12/16] 0.0, 128
  %785 = vxpose.xlu0.b32.cont [13/16] 0.0, 128
  %786 = vxpose.xlu0.b32.cont [14/16] 0.0, 128
  %787 = vxpose.xlu0.b32.cont [15/16] 0.0, 128
  %788 = vxpose.xlu0.b32.end [16/16] 0.0, 128
  %v789 = vpop.trf.xlu0
  %v790 = vpop.trf.xlu0
  %v791 = vpop.trf.xlu0
  %v792 = vpop.trf.xlu0
  %v793 = vpop.trf.xlu0
  %v794 = vpop.trf.xlu0
  %v795 = vpop.trf.xlu0
  %v796 = vpop.trf.xlu0
  %v797 = vpop.trf.xlu0
  %v798 = vpop.trf.xlu0
  %v799 = vpop.trf.xlu0
  %v800 = vpop.trf.xlu0
  %v801 = vpop.trf.xlu0
  %v802 = vpop.trf.xlu0
  %v803 = vpop.trf.xlu0
  %v804 = vpop.trf.xlu0
  %v805 = vperm.slane %v789, 0
  %v806 = vperm.slane %v789, 1
  %v807 = vsel %vm265, %v805, %v806
  %v809 = vrot.slane %v736, 2
  %810 = vrot.lane.b32.xlu0 %v809, 127
  %v811 = vpop.permute.xlu0 %810
  %v813 = vsel %vm265, %v736, %v811
  %815 = vset.pattern.permute.xlu0 0
  %816 = vperm.xlu0 %815, %v813
  %v817 = vpop.permute.xlu0 %816
  %819 = vset.pattern.permute.xlu0 0
  %820 = vperm.xlu0 %819, %v811
  %v821 = vpop.permute.xlu0 %820
  %v823 = vadd.f32 %v817, %v807
  %v824 = vadd.f32 %v821, %v806
  %vm825 = vcmp.gt.f32.partialorder %v823, 0.0
  %vm826 = vcmp.gt.f32.partialorder %v824, 0.0
  %v827 = vmul.f32 %v823, 0.2
  %v828 = vmul.f32 %v824, 0.2
  %v829 = vsel %vm825, %v823, %v827
  %v830 = vsel %vm826, %v824, %v828
  %833 = vrot.lane.b32.xlu0 %v829, 32
  %v834 = vpop.permute.xlu0 %833
  %835 = vrot.lane.b32.xlu0 %v830, 32
  %v836 = vpop.permute.xlu0 %835
  %v839 = vsel %vm445, %v834, -1e+30
  %v840 = vsel %vm446, %v836, -1e+30
  %v841 = vsel %vm158, %v839, -inf
  %842 = vmax.xlane.f32.xlu0 %v841
  %v843 = vpop.xlane.xlu0 %842
  %v844 = vsel %vm460, %v840, -inf
  %845 = vmax.xlane.f32.xlu0 %v844
  %v846 = vpop.xlane.xlu0 %845
  %v847 = vsub.f32 %v839, %v843
  %v848 = vsub.f32 %v840, %v846
  %v849 = vmul.f32 %v847, 1.442695
  %v850 = vpow.pop %v849
  %v851 = vmul.f32 %v848, 1.442695
  %v852 = vpow.pop %v851
  %v853 = vmul.f32 %v850, %v427
  %v854 = vmul.f32 %v852, %v425
  %857 = vrot.lane.b32.xlu0 %v853, 96
  %v858 = vpop.permute.xlu0 %857
  %859 = vrot.lane.b32.xlu0 %v854, 96
  %v860 = vpop.permute.xlu0 %859
  %v863 = vsel %vm192, %v858, 0.0
  %864 = vadd.xlane.f32.xlu0 %v863
  %v865 = vpop.xlane.xlu0 %864
  %v866 = vsel %vm483, %v860, 0.0
  %867 = vadd.xlane.f32.xlu0 %v866
  %v868 = vpop.xlane.xlu0 %867
  %v869 = vmax.f32 %v865, 1e-20
  %v870 = vmax.f32 %v868, 1e-20
  %v871 = vrcp.pop %v869
  %v872 = vmul.f32 %v869, %v871
  %v873 = vsub.f32 1.0, %v872
  %v874 = vmul.f32 %v871, %v873
  %v875 = vadd.f32 %v871, %v874
  %vm876 = vweird.f32 %v869
  %vm877 = vweird.f32 %v871
  %vm878 = vmor %vm876, %vm877
  %v879 = vsel %vm878, %v871, %v875
  %v880 = vand.u32 2147483647, %v869
  %vm881 = vcmp.eq.f32.partialorder %v880, 8.507059e+37
  %v882 = vand.u32 %v869, 2147483648
  %v883 = vor.u32 1.1754944e-38, %v882
  %v884 = vsel %vm881, %v883, %v879
  %v885 = vmul.f32 %v853, %v884
  %v886 = vrcp.pop %v870
  %v887 = vmul.f32 %v870, %v886
  %v888 = vsub.f32 1.0, %v887
  %v889 = vmul.f32 %v886, %v888
  %v890 = vadd.f32 %v886, %v889
  %vm891 = vweird.f32 %v870
  %vm892 = vweird.f32 %v886
  %vm893 = vmor %vm891, %vm892
  %v894 = vsel %vm893, %v886, %v890
  %v895 = vand.u32 2147483647, %v870
  %vm896 = vcmp.eq.f32.partialorder %v895, 8.507059e+37
  %v897 = vand.u32 %v870, 2147483648
  %v898 = vor.u32 1.1754944e-38, %v897
  %v899 = vsel %vm896, %v898, %v894
  %v900 = vmul.f32 %v854, %v899
  %v901 = vpack.c.bf16 %v900, %v885
  %v902 = vpack.c.bf16 %v712, %v710
  %904 = vrot.lane.b32.xlu0 %v901, 96
  %v905 = vpop.permute.xlu0 %904
  %v907 = vsel %vm192, %v905, 0
  %v910 = vsel %vm265, %v902, 0
  %912 = vmatpush.bf16.msra.mxu0 0
  %913 = vmatpush.bf16.msra.mxu0 0
  %914 = vmatpush.bf16.msra.mxu0 0
  %915 = vmatpush.bf16.msra.mxu0 0
  %916 = vmatpush.bf16.msra.mxu0 0
  %917 = vmatpush.bf16.msra.mxu0 0
  %918 = vmatpush.bf16.msra.mxu0 0
  %919 = vmatpush.bf16.msra.mxu0 %v910
  %920 = vmatmul.bf16.gmra.mxu0 %v907
  %v921 = vpop.f32.mrf.mxu0
  %v922 = vadd.f32 0.0, %v921
  %v923 = vpop.f32.mrf.mxu0
  %v924 = vadd.f32 0.0, %v923
  %925 = vdwg.mxu0
  %v926 = vmul.f32 %v922, %v18
  %v927 = vadd.f32 %v699, %v926
  %v928 = vmul.f32 %v922, %v23
  %v929 = vmul.f32 %v924, %v23
  %v932 = vrot.slane %v928, 6
  %v933 = vrot.slane %v929, 6
  %v934 = vsel %vm550, %v932, %v933
  %v936 = vadd.f32 %v927, %v934
  %v937 = vmax.f32 %v936, 0.0
  %938 = vrot.lane.b32.xlu0 %v710, 62
  %v939 = vpop.permute.xlu0 %938
  %940 = vrot.lane.b32.xlu0 %v712, 62
  %v941 = vpop.permute.xlu0 %940
  %944 = vxpose.xlu0.b32.start [1/16] %v939, 128
  %945 = vxpose.xlu0.b32.cont [2/16] %v941, 128
  %946 = vxpose.xlu0.b32.cont [3/16] 0.0, 128
  %947 = vxpose.xlu0.b32.cont [4/16] 0.0, 128
  %948 = vxpose.xlu0.b32.cont [5/16] 0.0, 128
  %949 = vxpose.xlu0.b32.cont [6/16] 0.0, 128
  %950 = vxpose.xlu0.b32.cont [7/16] 0.0, 128
  %951 = vxpose.xlu0.b32.cont [8/16] 0.0, 128
  %952 = vxpose.xlu0.b32.cont [9/16] 0.0, 128
  %953 = vxpose.xlu0.b32.cont [10/16] 0.0, 128
  %954 = vxpose.xlu0.b32.cont [11/16] 0.0, 128
  %955 = vxpose.xlu0.b32.cont [12/16] 0.0, 128
  %956 = vxpose.xlu0.b32.cont [13/16] 0.0, 128
  %957 = vxpose.xlu0.b32.cont [14/16] 0.0, 128
  %958 = vxpose.xlu0.b32.cont [15/16] 0.0, 128
  %959 = vxpose.xlu0.b32.end [16/16] 0.0, 128
  %v960 = vpop.trf.xlu0
  %v961 = vpop.trf.xlu0
  %v962 = vpop.trf.xlu0
  %v963 = vpop.trf.xlu0
  %v964 = vpop.trf.xlu0
  %v965 = vpop.trf.xlu0
  %v966 = vpop.trf.xlu0
  %v967 = vpop.trf.xlu0
  %v968 = vpop.trf.xlu0
  %v969 = vpop.trf.xlu0
  %v970 = vpop.trf.xlu0
  %v971 = vpop.trf.xlu0
  %v972 = vpop.trf.xlu0
  %v973 = vpop.trf.xlu0
  %v974 = vpop.trf.xlu0
  %v975 = vpop.trf.xlu0
  %v976 = vperm.slane %v960, 0
  %v977 = vperm.slane %v960, 1
  %v978 = vsel %vm96, %v976, %v977
  %v980 = vrot.slane %v762, 4
  %981 = vrot.lane.b32.xlu0 %v980, 127
  %v982 = vpop.permute.xlu0 %981
  %v984 = vsel %vm96, %v762, %v982
  %986 = vset.pattern.permute.xlu0 0
  %987 = vperm.xlu0 %986, %v984
  %v988 = vpop.permute.xlu0 %987
  %v990 = vadd.f32 %v988, %v978
  %vm991 = vcmp.gt.f32.partialorder %v990, 0.0
  %v992 = vmul.f32 %v990, 0.2
  %v993 = vsel %vm991, %v990, %v992
  %995 = vrot.lane.b32.xlu0 %v993, 32
  %v996 = vpop.permute.xlu0 %995
  %v998 = vsel %vm617, %v996, -1e+30
  %v999 = vsel %vm158, %v998, -inf
  %1000 = vmax.xlane.f32.xlu0 %v999
  %v1001 = vpop.xlane.xlu0 %1000
  %v1002 = vsub.f32 %v998, %v1001
  %v1003 = vmul.f32 %v1002, 1.442695
  %v1004 = vpow.pop %v1003
  %v1005 = vmul.f32 %v1004, %v607
  %1007 = vrot.lane.b32.xlu0 %v1005, 96
  %v1008 = vpop.permute.xlu0 %1007
  %v1010 = vsel %vm192, %v1008, 0.0
  %1011 = vadd.xlane.f32.xlu0 %v1010
  %v1012 = vpop.xlane.xlu0 %1011
  %v1013 = vmax.f32 %v1012, 1e-20
  %v1014 = vrcp.pop %v1013
  %v1015 = vmul.f32 %v1013, %v1014
  %v1016 = vsub.f32 1.0, %v1015
  %v1017 = vmul.f32 %v1014, %v1016
  %v1018 = vadd.f32 %v1014, %v1017
  %vm1019 = vweird.f32 %v1013
  %vm1020 = vweird.f32 %v1014
  %vm1021 = vmor %vm1019, %vm1020
  %v1022 = vsel %vm1021, %v1014, %v1018
  %v1023 = vand.u32 2147483647, %v1013
  %vm1024 = vcmp.eq.f32.partialorder %v1023, 8.507059e+37
  %v1025 = vand.u32 %v1013, 2147483648
  %v1026 = vor.u32 1.1754944e-38, %v1025
  %v1027 = vsel %vm1024, %v1026, %v1022
  %v1028 = vmul.f32 %v1005, %v1027
  %v1029 = vpack.c.bf16 %v1028, %v1028
  %1031 = vrot.lane.b32.xlu0 %v1029, 96
  %v1032 = vpop.permute.xlu0 %1031
  %1034 = vrot.lane.b32.xlu0 %v902, 96
  %v1035 = vpop.permute.xlu0 %1034
  %v1037 = vsel %vm192, %v1032, 0
  %v1040 = vsel %vm265, %v1035, 0
  %1042 = vmatpush.bf16.msra.mxu0 0
  %1043 = vmatpush.bf16.msra.mxu0 0
  %1044 = vmatpush.bf16.msra.mxu0 0
  %1045 = vmatpush.bf16.msra.mxu0 0
  %1046 = vmatpush.bf16.msra.mxu0 0
  %1047 = vmatpush.bf16.msra.mxu0 0
  %1048 = vmatpush.bf16.msra.mxu0 0
  %1049 = vmatpush.bf16.msra.mxu0 %v1040
  %1050 = vmatmul.bf16.gmra.mxu0 %v1037
  %v1051 = vpop.f32.mrf.mxu0
  %v1052 = vadd.f32 0.0, %v1051
  %v1053 = vpop.f32.mrf.mxu0
  %1054 = vdwg.mxu0
  %v1055 = vmul.f32 %v1052, %v18
  %1057 = vrot.lane.b32.xlu0 %v1055, 32
  %v1058 = vpop.permute.xlu0 %1057
  %v1060 = vadd.f32 %v699, %v1058
  %v1061 = vmul.f32 %v1052, %v23
  %v1063 = vrot.slane %v1061, 4
  %1064 = vrot.lane.b32.xlu0 %v1063, 32
  %v1065 = vpop.permute.xlu0 %1064
  %v1067 = vadd.f32 %v1060, %v1065
  %v1068 = vmax.f32 %v1067, 0.0
  %v1069 = vmul.f32 %v937, %v937
  %vm1070 = vcmask 259072
  %v1071 = vsel %vm1070, %v1069, 0.0
  %1072 = vadd.xlane.f32.xlu0 %v1071
  %v1073 = vpop.xlane.xlu0 %1072
  %v1074 = vmax.f32 %v1073, 1e-24
  %v1075 = vrsqrt.pop %v1074
  %v1076 = vmul.f32 %v1075, %v1074
  %v1077 = vmul.f32 %v1076, %v1075
  %v1078 = vmul.f32 0.5, %v1077
  %v1079 = vsub.f32 1.5, %v1078
  %v1080 = vmul.f32 %v1075, %v1079
  %vm1081 = vweird.f32 %v1074
  %vm1082 = vweird.f32 %v1075
  %vm1083 = vmor %vm1081, %vm1082
  %v1084 = vsel %vm1083, %v1075, %v1080
  %v1085 = vmul.f32 %v937, %v1084
  %v1086 = vpack.c.bf16 %v1085, %v1085
  %v1087 = vmul.f32 %v1068, %v1068
  %1089 = vrot.lane.b32.xlu0 %v1087, 96
  %v1090 = vpop.permute.xlu0 %1089
  %vm1092 = vcmask 257024
  %v1093 = vsel %vm1092, %v1090, 0.0
  %1094 = vadd.xlane.f32.xlu0 %v1093
  %v1095 = vpop.xlane.xlu0 %1094
  %v1096 = vmax.f32 %v1095, 1e-24
  %v1097 = vrsqrt.pop %v1096
  %v1098 = vmul.f32 %v1097, %v1096
  %v1099 = vmul.f32 %v1098, %v1097
  %v1100 = vmul.f32 0.5, %v1099
  %v1101 = vsub.f32 1.5, %v1100
  %v1102 = vmul.f32 %v1097, %v1101
  %vm1103 = vweird.f32 %v1096
  %vm1104 = vweird.f32 %v1097
  %vm1105 = vmor %vm1103, %vm1104
  %v1106 = vsel %vm1105, %v1097, %v1102
  %v1107 = vmul.f32 %v1068, %v1106
  %v1108 = vpack.c.bf16 %v1107, %v1107
  %v1109 = vld [vmem:[%s1 + $0xf0] sm:$0xff]
  %v1110 = vld [vmem:[%s1 + $0xf8] sm:$0xff]
  %v1111 = vld [vmem:[%s1 + $0x100] sm:$0xff]
  %v1112 = vld [vmem:[%s1 + $0x108] sm:$0xff]
  %v1113 = vld [vmem:[%s1 + $0x110] sm:$0xff]
  %v1114 = vld [vmem:[%s1 + $0x118] sm:$0xff]
  %v1115 = vld [vmem:[%s1 + $0x120] sm:$0xff]
  %v1116 = vld [vmem:[%s1 + $0x128] sm:$0xff]
  %v1117 = vpack.c.bf16 %v1111, %v1109
  %v1118 = vpack.c.bf16 %v1112, %v1110
  %v1119 = vpack.c.bf16 %v1115, %v1113
  %v1120 = vpack.c.bf16 %v1116, %v1114
  %v1121 = vld [vmem:[%s1 + $0x130] sm:$0xff]
  %v1122 = vld [vmem:[%s1 + $0x138] sm:$0xff]
  %v1123 = vld [vmem:[%s1 + $0x140] sm:$0xff]
  %v1124 = vld [vmem:[%s1 + $0x148] sm:$0xff]
  %v1125 = vld [vmem:[%s1 + $0x150] sm:$0xff]
  %v1126 = vld [vmem:[%s1 + $0x158] sm:$0xff]
  %v1127 = vld [vmem:[%s1 + $0x160] sm:$0xff]
  %v1128 = vld [vmem:[%s1 + $0x168] sm:$0xff]
  %v1129 = vpack.c.bf16 %v1123, %v1121
  %v1130 = vpack.c.bf16 %v1124, %v1122
  %v1131 = vpack.c.bf16 %v1127, %v1125
  %v1132 = vpack.c.bf16 %v1128, %v1126
  %v1133 = vld [vmem:[%s1 + $0x170] sm:$0xff]
  %v1134 = vld [vmem:[%s1 + $0x178] sm:$0xff]
  %v1135 = vld [vmem:[%s1 + $0x180] sm:$0xff]
  %v1136 = vld [vmem:[%s1 + $0x188] sm:$0xff]
  %v1137 = vld [vmem:[%s1 + $0x190] sm:$0xff]
  %v1138 = vld [vmem:[%s1 + $0x198] sm:$0xff]
  %v1139 = vld [vmem:[%s1 + $0x1a0] sm:$0xff]
  %v1140 = vld [vmem:[%s1 + $0x1a8] sm:$0xff]
  %v1141 = vpack.c.bf16 %v1135, %v1133
  %v1142 = vpack.c.bf16 %v1136, %v1134
  %v1143 = vpack.c.bf16 %v1139, %v1137
  %v1144 = vpack.c.bf16 %v1140, %v1138
  %1145 = vst [vmem:[%s2] sm:$0xff] 0.0
  %vm1146 = vcmask 523264
  %1147 = vst.msk [vmem:[%s2 + $0x8] sm:$0xff] %vm1146, 0.0
  %1148 = vst [vmem:[%s2 + $0x10] sm:$0xff] 0.0
  %1149 = vst.msk [vmem:[%s2 + $0x18] sm:$0xff] %vm1146, 0.0
  %1150 = vst [vmem:[%s2 + $0x20] sm:$0xff] 0.0
  %1151 = vst.msk [vmem:[%s2 + $0x28] sm:$0xff] %vm1146, 0.0
  %v1153 = vsel %vm36, %v1086, 0
  %1155 = vmatpush.bf16.msra.mxu0 0
  %1156 = vmatpush.bf16.msra.mxu0 0
  %1157 = vmatpush.bf16.msra.mxu0 0
  %1158 = vmatpush.bf16.msra.mxu0 0
  %1159 = vmatpush.bf16.msra.mxu0 0
  %1160 = vmatpush.bf16.msra.mxu0 0
  %1161 = vmatpush.bf16.msra.mxu0 %v1119
  %1162 = vmatpush.bf16.msra.mxu0 %v1117
  %1163 = vmatmul.bf16.gmra.mxu0 %v1153
  %v1164 = vpop.f32.mrf.mxu0
  %v1165 = vadd.f32 0.0, %v1164
  %v1166 = vpop.f32.mrf.mxu0
  %1167 = vdwg.mxu0
  %1168 = vmatpush.bf16.msra.mxu0 0
  %1169 = vmatpush.bf16.msra.mxu0 0
  %1170 = vmatpush.bf16.msra.mxu0 0
  %1171 = vmatpush.bf16.msra.mxu0 0
  %1172 = vmatpush.bf16.msra.mxu0 0
  %1173 = vmatpush.bf16.msra.mxu0 0
  %1174 = vmatpush.bf16.msra.mxu0 %v1120
  %1175 = vmatpush.bf16.msra.mxu0 %v1118
  %1176 = vmatmul.bf16.gmra.mxu0 %v1153
  %v1177 = vpop.f32.mrf.mxu0
  %v1178 = vadd.f32 0.0, %v1177
  %v1179 = vpop.f32.mrf.mxu0
  %1180 = vdwg.mxu0
  %1181 = vst [vmem:[%s2] sm:$0x3f] %v1165
  %vm1182 = vcmask 521216
  %1183 = vst.msk [vmem:[%s2 + $0x8] sm:$0x3f] %vm1182, %v1178
  %1184 = vmatpush.bf16.msra.mxu0 0
  %1185 = vmatpush.bf16.msra.mxu0 0
  %1186 = vmatpush.bf16.msra.mxu0 0
  %1187 = vmatpush.bf16.msra.mxu0 0
  %1188 = vmatpush.bf16.msra.mxu0 0
  %1189 = vmatpush.bf16.msra.mxu0 0
  %1190 = vmatpush.bf16.msra.mxu0 %v1131
  %1191 = vmatpush.bf16.msra.mxu0 %v1129
  %1192 = vmatmul.bf16.gmra.mxu0 %v1153
  %v1193 = vpop.f32.mrf.mxu0
  %v1194 = vadd.f32 0.0, %v1193
  %v1195 = vpop.f32.mrf.mxu0
  %1196 = vdwg.mxu0
  %1197 = vmatpush.bf16.msra.mxu0 0
  %1198 = vmatpush.bf16.msra.mxu0 0
  %1199 = vmatpush.bf16.msra.mxu0 0
  %1200 = vmatpush.bf16.msra.mxu0 0
  %1201 = vmatpush.bf16.msra.mxu0 0
  %1202 = vmatpush.bf16.msra.mxu0 0
  %1203 = vmatpush.bf16.msra.mxu0 %v1132
  %1204 = vmatpush.bf16.msra.mxu0 %v1130
  %1205 = vmatmul.bf16.gmra.mxu0 %v1153
  %v1206 = vpop.f32.mrf.mxu0
  %v1207 = vadd.f32 0.0, %v1206
  %v1208 = vpop.f32.mrf.mxu0
  %1209 = vdwg.mxu0
  %1210 = vst [vmem:[%s2 + $0x10] sm:$0x3f] %v1194
  %1211 = vst.msk [vmem:[%s2 + $0x18] sm:$0x3f] %vm1182, %v1207
  %1213 = vrot.lane.b32.xlu0 %v1108, 96
  %v1214 = vpop.permute.xlu0 %1213
  %v1216 = vsel %vm36, %v1214, 0
  %1218 = vmatpush.bf16.msra.mxu0 0
  %1219 = vmatpush.bf16.msra.mxu0 0
  %1220 = vmatpush.bf16.msra.mxu0 0
  %1221 = vmatpush.bf16.msra.mxu0 0
  %1222 = vmatpush.bf16.msra.mxu0 0
  %1223 = vmatpush.bf16.msra.mxu0 0
  %1224 = vmatpush.bf16.msra.mxu0 %v1143
  %1225 = vmatpush.bf16.msra.mxu0 %v1141
  %1226 = vmatmul.bf16.gmra.mxu0 %v1216
  %v1227 = vpop.f32.mrf.mxu0
  %v1228 = vadd.f32 0.0, %v1227
  %v1229 = vpop.f32.mrf.mxu0
  %1230 = vdwg.mxu0
  %1231 = vmatpush.bf16.msra.mxu0 0
  %1232 = vmatpush.bf16.msra.mxu0 0
  %1233 = vmatpush.bf16.msra.mxu0 0
  %1234 = vmatpush.bf16.msra.mxu0 0
  %1235 = vmatpush.bf16.msra.mxu0 0
  %1236 = vmatpush.bf16.msra.mxu0 0
  %1237 = vmatpush.bf16.msra.mxu0 %v1144
  %1238 = vmatpush.bf16.msra.mxu0 %v1142
  %1239 = vmatmul.bf16.gmra.mxu0 %v1216
  %v1240 = vpop.f32.mrf.mxu0
  %v1241 = vadd.f32 0.0, %v1240
  %v1242 = vpop.f32.mrf.mxu0
  %1243 = vdwg.mxu0
  %1244 = vst [vmem:[%s2 + $0x20] sm:$0xf] %v1228
  %vm1245 = vcmask 519168
  %1246 = vst.msk [vmem:[%s2 + $0x28] sm:$0xf] %vm1245, %v1241
  // Predicated region
  $region10: #{ae_forward.2} parent=0 // pred_check
    _
  $region11: #{ae_forward.2} parent=0 // pred_check_branch
    %1248 = sbr.rel (0) target = $region13
  $region12: #{ae_forward.2} parent=0 // pred_region
    _
  $region13: #{ae_forward.2} parent=0 // pred_fallthru
    _
  // Predicated region
  $region14: #{ae_forward.2} parent=0 // pred_check
    _
  $region15: #{ae_forward.2} parent=0 // pred_check_branch
    %1250 = sbr.rel (0) target = $region17
  $region16: #{ae_forward.2} parent=0 // pred_region
    _
  $region17: #{ae_forward.2} parent=0 // pred_fallthru
    _

</llo_original>
